<compile_context>
chip_gen: v6e
topology: v6e:2x2x1
jax: 0.10.0
libtpu: 0.0.40
codegen_flags: <defaults>
</compile_context>

<pallas_src>
import math

import jax
import jax.numpy as jnp
import numpy as np
from jax.experimental import pallas as pl
from jax.experimental.pallas import tpu as pltpu


def _round_up(x, m):
    return ((x + m - 1) // m) * m


def _vmem_capacity_bytes(default=64 * 1024 * 1024):
    """Physical VMEM of the local TPU generation (conservative fallback)."""
    try:
        info = pltpu.get_tpu_info()
    except Exception:
        return default
    for name in ("vmem_capacity_bytes", "vmem_size_bytes", "vmem_bytes"):
        cap = getattr(info, name, None)
        if isinstance(cap, (int, np.integer)) and int(cap) > 0:
            return int(cap)
    return default


# ----------------------------- Pallas kernel --------------------------------
def _cls_head_kernel(x_ref, w_ref, b_ref, o_ref):
    # x_ref: (TR, 3*Cin)          bf16  rows = (image-row, padded-width) flat
    # w_ref: (3, 3*Cin, Cout_pad) bf16  per-kx weight slabs, VMEM resident
    # b_ref: (1, Cout_pad)        f32   bias (zero padded)
    # o_ref: (TR, Cout_pad)       f32   sigmoid(conv) rows for this tile
    #
    # Output row with padded-width index wp holds output pixel w = wp - 2, so
    # the kx tap needs partial row (wp - 2 + kx) = roll by (2 - kx) >= 0.
    # kx = 2 needs no shift -> use it to initialize the accumulator in place.
    o_ref[...] = b_ref[...] + jnp.dot(
        x_ref[...], w_ref[2], preferred_element_type=jnp.float32)
    for kx in (0, 1):  # static unroll -> 2 more MXU passes
        p = jnp.dot(x_ref[...], w_ref[kx],
                    preferred_element_type=jnp.float32)
        o_ref[...] += pltpu.roll(p, shift=2 - kx, axis=0)
    # Sigmoid in f32; exp runs on the EUP.  Rows/lanes that correspond to
    # width / channel padding are sliced off in the wrapper.
    o_ref[...] = 1.0 / (1.0 + jnp.exp(-o_ref[...]))


# ------------------------------- wrapper -------------------------------------
def cls_head_forward(x_nchw, weight, bias, num_anchors, num_classes,
                     *, max_rows_per_tile=None, vmem_budget_bytes=None):
    """x_nchw: (N, Cin, H, W) float32
    weight: (Cout, Cin, 3, 3) float32  (PyTorch Conv2d layout)
    bias:   (Cout,) float32
    returns (N, H*W*num_anchors, num_classes) float32
    """
    n, cin, h, w = map(int, x_nchw.shape)
    cout = num_anchors * num_classes
    kc = 3 * cin
    cout_pad = _round_up(cout, 128)        # lane-dense output / MXU N-dim
    w_pad = _round_up(w + 2, 8)            # halo + layout-free row collapse
    rows_nh = n * h                        # total image rows (N folded in)
    r_total = rows_nh * w_pad

    # ---- glue (plain JAX): NHWC bf16, spatial pad, ky fold, row flatten ------
    x = jnp.transpose(x_nchw, (0, 2, 3, 1)).astype(jnp.bfloat16)     # (N,H,W,Cin)
    xp = jnp.pad(x, ((0, 0), (1, 1), (1, w_pad - w - 1), (0, 0)))    # (N,H+2,Wp,Cin)
    # xh[n, h, wp, ky*Cin + c] = xp[n, h+ky, wp, c]
    xh = jnp.concatenate([xp[:, ky:ky + h, :, :] for ky in range(3)], axis=-1)
    xh2d = xh.reshape(r_total, kc)                                   # (N*H*Wp, 3Cin)

    # (Cout,Cin,3,3) -> (kx, ky*Cin+c, Cout) -> zero-pad Cout -> bf16
    w_taps = jnp.transpose(weight, (3, 2, 1, 0)).reshape(3, kc, cout)
    w_taps = jnp.pad(w_taps, ((0, 0), (0, 0), (0, cout_pad - cout)))
    w_taps = w_taps.astype(jnp.bfloat16)
    b2 = jnp.pad(bias, (0, cout_pad - cout)).reshape(1, cout_pad)
    b2 = b2.astype(jnp.float32)

    # ---- generation-aware VMEM budget & tile selection -----------------------
    if vmem_budget_bytes is None:
        vmem_budget_bytes = int(0.75 * _vmem_capacity_bytes())
    vmem_limit = int(vmem_budget_bytes)

    wts_bytes = 3 * kc * cout_pad * 2 + cout_pad * 4   # resident weights + bias

    def _fits(t):                                      # t = image rows / tile
        tr = t * w_pad
        in_blk = tr * kc * 2                           # bf16, double-buffered
        out_blk = tr * cout_pad * 4                    # f32,  double-buffered
        temps = 3 * out_blk                            # dot + roll temporaries
        return 2 * in_blk + 2 * out_blk + wts_bytes + temps <= vmem_budget_bytes

    cands = [t for t in range(1, rows_nh + 1) if rows_nh % t == 0 and _fits(t)]
    if not cands:
        raise ValueError("no tile size fits the VMEM budget")
    if max_rows_per_tile is not None:
        cands = [t for t in cands if t <= max_rows_per_tile] or cands[:1]

    def _pref(t):
        g = rows_nh // t
        # >=2 grid steps (dual-TC v7x), bf16 16-row alignment, even grid, size.
        return (g >= 2, (t * w_pad) % 16 == 0, g % 2 == 0, t)

    tile_rows_h = max(cands, key=_pref)
    tr = tile_rows_h * w_pad
    grid = (rows_nh // tile_rows_h,)

    # ---- hot path: Pallas kernel over row blocks -----------------------------
    out2d = pl.pallas_call(
        _cls_head_kernel,
        out_shape=jax.ShapeDtypeStruct((r_total, cout_pad), jnp.float32),
        grid_spec=pltpu.PrefetchScalarGridSpec(
            num_scalar_prefetch=0,
            grid=grid,
            in_specs=[
                pl.BlockSpec((tr, kc), lambda i: (i, 0)),
                pl.BlockSpec((3, kc, cout_pad), lambda i: (0, 0, 0)),
                pl.BlockSpec((1, cout_pad), lambda i: (0, 0)),
            ],
            out_specs=pl.BlockSpec((tr, cout_pad), lambda i: (i, 0)),
        ),
        compiler_params=pltpu.CompilerParams(
            dimension_semantics=("parallel",),
            vmem_limit_bytes=vmem_limit),
    )(xh2d, w_taps, b2)

    # ---- glue: drop width/channel padding, PyTorch element order -------------
    # output pixel (n, h, w) lives at padded-width index wp = w + 2.
    out = out2d.reshape(n, h, w_pad, cout_pad)[:, :, 2:w + 2, :cout]
    return out.reshape(n, h * w * num_anchors, num_classes)


# ------------------------------ reference ------------------------------------
def cls_head_reference(x_nchw, weight, bias, num_anchors, num_classes):
    # Same numerics as the kernel path: bf16-rounded operands, f32 accumulate.
    x = jnp.transpose(x_nchw, (0, 2, 3, 1))
    x = x.astype(jnp.bfloat16).astype(jnp.float32)
    w_hwio = jnp.transpose(weight, (2, 3, 1, 0))
    w_hwio = w_hwio.astype(jnp.bfloat16).astype(jnp.float32)
    y = jax.lax.conv_general_dilated(
        x, w_hwio, window_strides=(1, 1), padding="SAME",
        dimension_numbers=("NHWC", "HWIO", "NHWC"),
        precision=jax.lax.Precision.HIGHEST)
    y = jax.nn.sigmoid(y + bias[None, None, None, :])
    n, hh, ww, _ = y.shape
    return y.reshape(n, hh * ww * num_anchors, num_classes)


if __name__ == "__main__":
    # Small, module-consistent shapes.
    N, FEAT_CHANNELS, H, W = 2, 32, 16, 16
    NUM_ANCHORS, NUM_CLASSES = 4, 8
    COUT = NUM_ANCHORS * NUM_CLASSES

    key = jax.random.PRNGKey(0)
    k_x, k_w = jax.random.split(key)
    x = jax.random.normal(k_x, (N, FEAT_CHANNELS, H, W), dtype=jnp.float32)

    # The PyTorch module zero-fills weights (RetinaNet paper init); use small
    # random weights so the compute path is exercised, keep the prior bias.
    weight = 0.05 * jax.random.normal(
        k_w, (COUT, FEAT_CHANNELS, 3, 3), dtype=jnp.float32)
    prior = 0.01
    bias = jnp.full((COUT,), -math.log((1.0 - prior) / prior), dtype=jnp.float32)

    out = cls_head_forward(x, weight, bias, NUM_ANCHORS, NUM_CLASSES)
    out = jax.block_until_ready(out)

    ref = cls_head_reference(x, weight, bias, NUM_ANCHORS, NUM_CLASSES)
    assert out.shape == (N, H * W * NUM_ANCHORS, NUM_CLASSES), out.shape
    np.testing.assert_allclose(np.asarray(out), np.asarray(ref),
                               rtol=1e-4, atol=1e-5)
    print("KERNEL_OK")
</pallas_src>

<mosaic_0001>
module attributes {stable_mosaic.version = 11 : i64} {
  func.func @_cls_head_kernel(%arg0: i32, %arg1: memref<384x96xbf16, #tpu.memory_space<vmem>>, %arg2: memref<3x96x128xbf16, #tpu.memory_space<vmem>>, %arg3: memref<1x128xf32, #tpu.memory_space<vmem>>, %arg4: memref<384x128xf32, #tpu.memory_space<vmem>>) attributes {dimension_semantics = [#tpu.dimension_semantics<parallel>], iteration_bounds = array<i64: 2>, scalar_prefetch = 0 : i64, scratch_operands = 0 : i64, tpu.core_type = #tpu.core_type<tc>, window_params = [{transform_indices = @transform_0, window_bounds = array<i64: 384, 96>}, {pipeline_mode = #tpu.pipeline_mode<synchronous>, transform_indices = @transform_1, window_bounds = array<i64: 3, 96, 128>}, {pipeline_mode = #tpu.pipeline_mode<synchronous>, transform_indices = @transform_2, window_bounds = array<i64: 1, 128>}, {transform_indices = @transform_3, window_bounds = array<i64: 384, 128>}]} {
    %c0 = arith.constant 0 : index
    %c0_0 = arith.constant 0 : index
    %0 = vector.load %arg3[%c0, %c0_0] : memref<1x128xf32, #tpu.memory_space<vmem>>, vector<1x128xf32>
    %c0_1 = arith.constant 0 : index
    %c0_2 = arith.constant 0 : index
    %1 = vector.load %arg1[%c0_1, %c0_2] : memref<384x96xbf16, #tpu.memory_space<vmem>>, vector<384x96xbf16>
    %c2 = arith.constant 2 : index
    %c0_3 = arith.constant 0 : index
    %c0_4 = arith.constant 0 : index
    %2 = vector.load %arg2[%c2, %c0_3, %c0_4] : memref<3x96x128xbf16, #tpu.memory_space<vmem>>, vector<1x96x128xbf16>
    %3 = vector.shape_cast %2 : vector<1x96x128xbf16> to vector<96x128xbf16>
    %cst = arith.constant dense<0.000000e+00> : vector<384x128xf32>
    %4 = tpu.matmul %1, %3, %cst {dimension_numbers = #tpu.dot_dimension_numbers<[1], [0], [0], [1], [0, 0, 1, 1], [], []>} : vector<384x96xbf16>, vector<96x128xbf16>, vector<384x128xf32> -> vector<384x128xf32>
    %5 = vector.broadcast %0 : vector<1x128xf32> to vector<384x128xf32>
    %6 = arith.addf %5, %4 : vector<384x128xf32>
    %c0_5 = arith.constant 0 : index
    %c0_6 = arith.constant 0 : index
    %7 = vector.load %arg4[%c0_5, %c0_6] : memref<384x128xf32, #tpu.memory_space<vmem>>, vector<384x128xf32>
    tpu.vector_store %arg4[%c0_5, %c0_6], %6 {strides = array<i32>} : memref<384x128xf32, #tpu.memory_space<vmem>>, vector<384x128xf32>,
    %c0_7 = arith.constant 0 : index
    %c0_8 = arith.constant 0 : index
    %8 = vector.load %arg1[%c0_7, %c0_8] : memref<384x96xbf16, #tpu.memory_space<vmem>>, vector<384x96xbf16>
    %c0_9 = arith.constant 0 : index
    %c0_10 = arith.constant 0 : index
    %c0_11 = arith.constant 0 : index
    %9 = vector.load %arg2[%c0_9, %c0_10, %c0_11] : memref<3x96x128xbf16, #tpu.memory_space<vmem>>, vector<1x96x128xbf16>
    %10 = vector.shape_cast %9 : vector<1x96x128xbf16> to vector<96x128xbf16>
    %cst_12 = arith.constant dense<0.000000e+00> : vector<384x128xf32>
    %11 = tpu.matmul %8, %10, %cst_12 {dimension_numbers = #tpu.dot_dimension_numbers<[1], [0], [0], [1], [0, 0, 1, 1], [], []>} : vector<384x96xbf16>, vector<96x128xbf16>, vector<384x128xf32> -> vector<384x128xf32>
    %c0_13 = arith.constant 0 : index
    %c0_14 = arith.constant 0 : index
    %12 = vector.load %arg4[%c0_13, %c0_14] : memref<384x128xf32, #tpu.memory_space<vmem>>, vector<384x128xf32>
    %c2_i32 = arith.constant 2 : i32
    %13 = tpu.dynamic_rotate %11 by %c2_i32 dim 0 : vector<384x128xf32>, i32 -> vector<384x128xf32>
    %14 = arith.addf %12, %13 : vector<384x128xf32>
    %c0_15 = arith.constant 0 : index
    %c0_16 = arith.constant 0 : index
    %15 = vector.load %arg4[%c0_15, %c0_16] : memref<384x128xf32, #tpu.memory_space<vmem>>, vector<384x128xf32>
    tpu.vector_store %arg4[%c0_15, %c0_16], %14 {strides = array<i32>} : memref<384x128xf32, #tpu.memory_space<vmem>>, vector<384x128xf32>,
    %c0_17 = arith.constant 0 : index
    %c0_18 = arith.constant 0 : index
    %16 = vector.load %arg1[%c0_17, %c0_18] : memref<384x96xbf16, #tpu.memory_space<vmem>>, vector<384x96xbf16>
    %c1 = arith.constant 1 : index
    %c0_19 = arith.constant 0 : index
    %c0_20 = arith.constant 0 : index
    %17 = vector.load %arg2[%c1, %c0_19, %c0_20] : memref<3x96x128xbf16, #tpu.memory_space<vmem>>, vector<1x96x128xbf16>
    %18 = vector.shape_cast %17 : vector<1x96x128xbf16> to vector<96x128xbf16>
    %cst_21 = arith.constant dense<0.000000e+00> : vector<384x128xf32>
    %19 = tpu.matmul %16, %18, %cst_21 {dimension_numbers = #tpu.dot_dimension_numbers<[1], [0], [0], [1], [0, 0, 1, 1], [], []>} : vector<384x96xbf16>, vector<96x128xbf16>, vector<384x128xf32> -> vector<384x128xf32>
    %c0_22 = arith.constant 0 : index
    %c0_23 = arith.constant 0 : index
    %20 = vector.load %arg4[%c0_22, %c0_23] : memref<384x128xf32, #tpu.memory_space<vmem>>, vector<384x128xf32>
    %c1_i32 = arith.constant 1 : i32
    %21 = tpu.dynamic_rotate %19 by %c1_i32 dim 0 : vector<384x128xf32>, i32 -> vector<384x128xf32>
    %22 = arith.addf %20, %21 : vector<384x128xf32>
    %c0_24 = arith.constant 0 : index
    %c0_25 = arith.constant 0 : index
    %23 = vector.load %arg4[%c0_24, %c0_25] : memref<384x128xf32, #tpu.memory_space<vmem>>, vector<384x128xf32>
    tpu.vector_store %arg4[%c0_24, %c0_25], %22 {strides = array<i32>} : memref<384x128xf32, #tpu.memory_space<vmem>>, vector<384x128xf32>,
    %c0_26 = arith.constant 0 : index
    %c0_27 = arith.constant 0 : index
    %24 = vector.load %arg4[%c0_26, %c0_27] : memref<384x128xf32, #tpu.memory_space<vmem>>, vector<384x128xf32>
    %cst_28 = arith.constant 0.000000e+00 : f32
    %25 = vector.broadcast %cst_28 : f32 to vector<384x128xf32>
    %26 = arith.subf %25, %24 : vector<384x128xf32>
    %27 = math.exp %26 : vector<384x128xf32>
    %cst_29 = arith.constant 1.000000e+00 : f32
    %28 = vector.broadcast %cst_29 : f32 to vector<384x128xf32>
    %29 = arith.addf %28, %27 : vector<384x128xf32>
    %cst_30 = arith.constant 1.000000e+00 : f32
    %30 = vector.broadcast %cst_30 : f32 to vector<384x128xf32>
    %31 = arith.divf %30, %29 : vector<384x128xf32>
    %c0_31 = arith.constant 0 : index
    %c0_32 = arith.constant 0 : index
    %32 = vector.load %arg4[%c0_31, %c0_32] : memref<384x128xf32, #tpu.memory_space<vmem>>, vector<384x128xf32>
    tpu.vector_store %arg4[%c0_31, %c0_32], %31 {strides = array<i32>} : memref<384x128xf32, #tpu.memory_space<vmem>>, vector<384x128xf32>,
    return
  }
  func.func @transform_0(%arg0: i32) -> (i32, i32) {
    %c0_i32 = arith.constant 0 : i32
    %c0_i32_0 = arith.constant 0 : i32
    return %arg0, %c0_i32 : i32, i32
  }
  func.func @transform_1(%arg0: i32) -> (i32, i32, i32) {
    %c0_i32 = arith.constant 0 : i32
    %c0_i32_0 = arith.constant 0 : i32
    %c0_i32_1 = arith.constant 0 : i32
    %c0_i32_2 = arith.constant 0 : i32
    return %c0_i32, %c0_i32_0, %c0_i32_1 : i32, i32, i32
  }
  func.func @transform_2(%arg0: i32) -> (i32, i32) {
    %c0_i32 = arith.constant 0 : i32
    %c0_i32_0 = arith.constant 0 : i32
    %c0_i32_1 = arith.constant 0 : i32
    return %c0_i32, %c0_i32_0 : i32, i32
  }
  func.func @transform_3(%arg0: i32) -> (i32, i32) {
    %c0_i32 = arith.constant 0 : i32
    %c0_i32_0 = arith.constant 0 : i32
    return %arg0, %c0_i32 : i32, i32
  }
}

</mosaic_0001>

<llo_original>
// kernel: tpu_custom_call.1
$region0: #{tpu_custom_call.1}
  #allocation0 [shape = 'u32[]', space=smem, size = 0x4, offset = 0x4, fixed_abs, tag = 'smem constant byte address 0x4 - core index']
  #allocation1 [shape = 'u32[144,128]{1,0:T(1,128)}', space=vmem, size = 0x12000, scoped, tag = 'internal scratch']
  %s0 = inlined_call_operand.vmem [shape: bf16[768,96], index: 0, kind: input, shape index: {}]
  %s1 = inlined_call_operand.vmem [shape: bf16[3,96,128], index: 1, kind: input, shape index: {}]
  %s2 = inlined_call_operand.vmem [shape: f32[1,128], index: 2, kind: input, shape index: {}]
  %s3 = inlined_call_operand.hbm [shape: f32[768,128], index: 3, kind: output, shape index: {}]
  %s4 = sld [smem:[#allocation0]]
  $region45: #{tpu_custom_call.1} parent=0
    _
  %s6 = ssub.s32 1, %s4
  %s7 = scalar_select 0, %s6, %s4
  $region1: #{tpu_custom_call.1} parent=0
    #allocation2 [shape = 'u8[393216]{0}', space=vmem, size = 0x60000, scoped, tag = 'output window, operand 0']
    #allocation3 [shape = 's32[2]{0}', space=sflag, size = 0x8, scoped, tag = 'scoped memory for tpu_custom_call.1']
    %8 = vsyncpa [#allocation3], 0
    %s9 = scalar_lea.sflag [#allocation3], 1
    %10 = vsyncpa %s9, 0
    loop: start=0, step=1, limit=4
    $region2: #{tpu_custom_call.1} parent=1 // loop_pre_header
      _
    $region3: #{tpu_custom_call.1} parent=1 // loop_header
      %s12 = sphi 0, %s16
      %p13 = scmp.ge.s32.totalorder %s12, 4
      %s22 = sphi 0, %s24
      %s25 = sphi 0, %s22
      %s26 = sphi 0, %s25
      %s42 = sphi 0, %s26
      %s46 = sphi 0, %s46
      %s48 = sphi 0, %s46
      %s49 = sphi 0, %s48
      %s63 = sphi 0, %s49
      %s67 = sphi 0, %s67
      %s69 = sphi 0, %s67
      %s70 = sphi 0, %s69
      %s84 = sphi 0, %s70
      %s90 = sphi 0, %s92
      %s93 = sphi 0, %s90
      %s94 = sphi 0, %s93
      %s110 = sphi 0, %s94
    $region4: #{tpu_custom_call.1} parent=1 // loop_header_branch
      %15 = sbr.rel (%p13) target = $region8
    $region5: #{tpu_custom_call.1} parent=1 // loop_body
      %s17 = ssub.s32 %s12, 1
      %s18 = ssub.s32 %s12, 2
      %s19 = sadd.s32 %s12, 1
      %s20 = ssub.s32 %s12, %s19
      %p21 = scmp.eq.s32.totalorder %s20, 0
      %s23 = sadd.s32 %s22, 1
      %s24 = scalar_select %p21, %s22, %s23
      %p27 = pneg %p21
      %p28 = scmp.eq.s32.totalorder %s12, 1
      %p29 = por %p27, %p28
      %p30 = scmp.ne.s32.totalorder %s22, %s25
      %p31 = scmp.eq.s32.totalorder %s12, 0
      %p32 = por %p30, %p31
      %p33 = scmp.ne.s32.totalorder %s22, %s25
      %p34 = scmp.eq.s32.totalorder %s17, 1
      %p35 = por %p33, %p34
      %p36 = scmp.ne.s32.totalorder %s25, %s26
      %p37 = scmp.eq.s32.totalorder %s17, 0
      %p38 = por %p36, %p37
      %p39 = scmp.ne.s32.totalorder %s25, %s26
      %p40 = scmp.eq.s32.totalorder %s18, 1
      %p41 = por %p39, %p40
      %p43 = scmp.ne.s32.totalorder %s26, %s42
      %p44 = scmp.eq.s32.totalorder %s18, 0
      %p45 = por %p43, %p44
      %s47 = sadd.s32 %s46, 1
      %p50 = scmp.eq.s32.totalorder %s12, 1
      %p51 = scmp.ne.s32.totalorder %s46, %s48
      %p52 = scmp.eq.s32.totalorder %s12, 0
      %p53 = por %p51, %p52
      %p54 = scmp.ne.s32.totalorder %s46, %s48
      %p55 = scmp.eq.s32.totalorder %s17, 1
      %p56 = por %p54, %p55
      %p57 = scmp.ne.s32.totalorder %s48, %s49
      %p58 = scmp.eq.s32.totalorder %s17, 0
      %p59 = por %p57, %p58
      %p60 = scmp.ne.s32.totalorder %s48, %s49
      %p61 = scmp.eq.s32.totalorder %s18, 1
      %p62 = por %p60, %p61
      %p64 = scmp.ne.s32.totalorder %s49, %s63
      %p65 = scmp.eq.s32.totalorder %s18, 0
      %p66 = por %p64, %p65
      %s68 = sadd.s32 %s67, 1
      %p71 = scmp.eq.s32.totalorder %s12, 1
      %p72 = scmp.ne.s32.totalorder %s67, %s69
      %p73 = scmp.eq.s32.totalorder %s12, 0
      %p74 = por %p72, %p73
      %p75 = scmp.ne.s32.totalorder %s67, %s69
      %p76 = scmp.eq.s32.totalorder %s17, 1
      %p77 = por %p75, %p76
      %p78 = scmp.ne.s32.totalorder %s69, %s70
      %p79 = scmp.eq.s32.totalorder %s17, 0
      %p80 = por %p78, %p79
      %p81 = scmp.ne.s32.totalorder %s69, %s70
      %p82 = scmp.eq.s32.totalorder %s18, 1
      %p83 = por %p81, %p82
      %p85 = scmp.ne.s32.totalorder %s70, %s84
      %p86 = scmp.eq.s32.totalorder %s18, 0
      %p87 = por %p85, %p86
      %s88 = ssub.s32 %s12, %s19
      %p89 = scmp.eq.s32.totalorder %s88, 0
      %s91 = sadd.s32 %s90, 1
      %s92 = scalar_select %p89, %s90, %s91
      %p95 = pneg %p89
      %p96 = scmp.eq.s32.totalorder %s12, 1
      %p97 = por %p95, %p96
      %p98 = scmp.ne.s32.totalorder %s90, %s93
      %p99 = scmp.eq.s32.totalorder %s12, 0
      %p100 = por %p98, %p99
      %p101 = scmp.ne.s32.totalorder %s90, %s93
      %p102 = scmp.eq.s32.totalorder %s17, 1
      %p103 = por %p101, %p102
      %p104 = scmp.ne.s32.totalorder %s93, %s94
      %p105 = scmp.eq.s32.totalorder %s17, 0
      %p106 = por %p104, %p105
      %p107 = scmp.ne.s32.totalorder %s93, %s94
      %p108 = scmp.eq.s32.totalorder %s18, 1
      %p109 = por %p107, %p108
      %p111 = scmp.ne.s32.totalorder %s94, %s110
      %p112 = scmp.eq.s32.totalorder %s18, 0
      %p113 = por %p111, %p112
      %p114 = scmp.le.s32.totalorder 1, %s12
      %p115 = scmp.lt.s32.totalorder %s12, 3
      %p116 = pnand %p114, %p115
      %p117 = pneg %p116
      // Predicated region
      $region9: #{tpu_custom_call.1} parent=5 // pred_check
        _
      $region10: #{tpu_custom_call.1} parent=5 // pred_check_branch
        %119 = sbr.rel (%p116) target = $region12
      $region11: #{tpu_custom_call.1} parent=5 // pred_region
        %s120 = ssub.s32 %s12, 1
        // Predicated region
        $region13: #{tpu_custom_call.1} parent=11 // pred_check
          %p121 = pneg %p59
        $region14: #{tpu_custom_call.1} parent=11 // pred_check_branch
          %123 = sbr.rel (%p121) target = $region16
        $region15: #{tpu_custom_call.1} parent=11 // pred_region
          _
        $region16: #{tpu_custom_call.1} parent=11 // pred_fallthru
          _
        // Predicated region
        $region17: #{tpu_custom_call.1} parent=11 // pred_check
          %p124 = pneg %p80
        $region18: #{tpu_custom_call.1} parent=11 // pred_check_branch
          %126 = sbr.rel (%p124) target = $region20
        $region19: #{tpu_custom_call.1} parent=11 // pred_region
          _
        $region20: #{tpu_custom_call.1} parent=11 // pred_fallthru
          _
      $region12: #{tpu_custom_call.1} parent=5 // pred_fallthru
        _
      %p127 = scmp.lt.s32.totalorder %s12, 2
      // Predicated region
      $region21: #{tpu_custom_call.1} parent=5 // pred_check
        %p128 = pneg %p127
      $region22: #{tpu_custom_call.1} parent=5 // pred_check_branch
        %130 = sbr.rel (%p128) target = $region24
      $region23: #{tpu_custom_call.1} parent=5 // pred_region
        // Predicated region
        $region25: #{tpu_custom_call.1} parent=23 // pred_check
          %p131 = pneg %p32
        $region26: #{tpu_custom_call.1} parent=23 // pred_check_branch
          %133 = sbr.rel (%p131) target = $region28
        $region27: #{tpu_custom_call.1} parent=23 // pred_region
          %s134 = smul.u32 48, %s12
          %p135 = scmp.lt.s32.totalorder %s134, 95
          %s136 = scalar_select %p135, %s134, 95
          %s137 = smul.addr %s136, 4
          %s138 = scalar_lea.vmem %s0, %s137
          %s139 = smul.u32 48, %s12
        $region28: #{tpu_custom_call.1} parent=23 // pred_fallthru
          _
      $region24: #{tpu_custom_call.1} parent=5 // pred_fallthru
        _
      %p140 = scmp.le.s32.totalorder 1, %s12
      %p141 = scmp.lt.s32.totalorder %s12, 3
      %p142 = pnand %p140, %p141
      %p143 = pneg %p142
      // Predicated region
      $region29: #{tpu_custom_call.1} parent=5 // pred_check
        _
      $region30: #{tpu_custom_call.1} parent=5 // pred_check_branch
        %145 = sbr.rel (%p142) target = $region32
      $region31: #{tpu_custom_call.1} parent=5 // pred_region
        %s146 = ssub.s32 %s12, 1
        %s147 = smul.u32 48, %s17
        %p148 = scmp.lt.s32.totalorder %s147, 95
        %s149 = scalar_select %p148, %s147, 95
        %s150 = smul.addr %s149, 4
        %s151 = scalar_lea.vmem %s0, %s150
        %p152 = pneg %p38
        %p153 = pneg %p35
        %p154 = pneg %p59
        %p155 = pneg %p56
        %p156 = pneg %p80
        %p157 = pneg %p77
        %p158 = pneg %p106
        %p159 = pneg %p103
        %s160 = sand.u32 %s93, 1
        %s161 = scalar_lea.sflag [#allocation3], %s160
        %s162 = sand.u32 %s93, 1
        %s163 = smul.addr %s162, 384
        %s164 = scalar_lea.vmem [#allocation2], %s163
        %s165 = smul.u32 48, %s17
        %p166 = scmp.lt.s32.totalorder %s165, 95
        %s167 = scalar_select %p166, %s165, 95
        %s168 = smul.addr %s167, 4
        %s169 = scalar_lea.vmem %s0, %s168
        %s170 = smul.u32 48, %s17
        %s171 = smul.u32 48, %s17
        %v173 = vld [vmem:[%s2] sm:$0x1]
        %v174 = vld [vmem:[%s169] sm:$0xf]
        %v175 = vld [vmem:[%s169 + $0x4] sm:$0xf]
        %v176 = vld [vmem:[%s169 + $0x8] sm:$0xf]
        %v177 = vld [vmem:[%s169 + $0xc] sm:$0xf]
        %v178 = vld [vmem:[%s169 + $0x10] sm:$0xf]
        %v179 = vld [vmem:[%s169 + $0x14] sm:$0xf]
        %v180 = vld [vmem:[%s169 + $0x18] sm:$0xf]
        %v181 = vld [vmem:[%s169 + $0x1c] sm:$0xf]
        %v182 = vld [vmem:[%s169 + $0x20] sm:$0xf]
        %v183 = vld [vmem:[%s169 + $0x24] sm:$0xf]
        %v184 = vld [vmem:[%s169 + $0x28] sm:$0xf]
        %v185 = vld [vmem:[%s169 + $0x2c] sm:$0xf]
        %v186 = vld [vmem:[%s169 + $0x30] sm:$0xf]
        %v187 = vld [vmem:[%s169 + $0x34] sm:$0xf]
        %v188 = vld [vmem:[%s169 + $0x38] sm:$0xf]
        %v189 = vld [vmem:[%s169 + $0x3c] sm:$0xf]
        %v190 = vld [vmem:[%s169 + $0x40] sm:$0xf]
        %v191 = vld [vmem:[%s169 + $0x44] sm:$0xf]
        %v192 = vld [vmem:[%s169 + $0x48] sm:$0xf]
        %v193 = vld [vmem:[%s169 + $0x4c] sm:$0xf]
        %v194 = vld [vmem:[%s169 + $0x50] sm:$0xf]
        %v195 = vld [vmem:[%s169 + $0x54] sm:$0xf]
        %v196 = vld [vmem:[%s169 + $0x58] sm:$0xf]
        %v197 = vld [vmem:[%s169 + $0x5c] sm:$0xf]
        %v198 = vld [vmem:[%s169 + $0x60] sm:$0xf]
        %v199 = vld [vmem:[%s169 + $0x64] sm:$0xf]
        %v200 = vld [vmem:[%s169 + $0x68] sm:$0xf]
        %v201 = vld [vmem:[%s169 + $0x6c] sm:$0xf]
        %v202 = vld [vmem:[%s169 + $0x70] sm:$0xf]
        %v203 = vld [vmem:[%s169 + $0x74] sm:$0xf]
        %v204 = vld [vmem:[%s169 + $0x78] sm:$0xf]
        %v205 = vld [vmem:[%s169 + $0x7c] sm:$0xf]
        %v206 = vld [vmem:[%s169 + $0x80] sm:$0xf]
        %v207 = vld [vmem:[%s169 + $0x84] sm:$0xf]
        %v208 = vld [vmem:[%s169 + $0x88] sm:$0xf]
        %v209 = vld [vmem:[%s169 + $0x8c] sm:$0xf]
        %v210 = vld [vmem:[%s169 + $0x90] sm:$0xf]
        %v211 = vld [vmem:[%s169 + $0x94] sm:$0xf]
        %v212 = vld [vmem:[%s169 + $0x98] sm:$0xf]
        %v213 = vld [vmem:[%s169 + $0x9c] sm:$0xf]
        %v214 = vld [vmem:[%s169 + $0xa0] sm:$0xf]
        %v215 = vld [vmem:[%s169 + $0xa4] sm:$0xf]
        %v216 = vld [vmem:[%s169 + $0xa8] sm:$0xf]
        %v217 = vld [vmem:[%s169 + $0xac] sm:$0xf]
        %v218 = vld [vmem:[%s169 + $0xb0] sm:$0xf]
        %v219 = vld [vmem:[%s169 + $0xb4] sm:$0xf]
        %v220 = vld [vmem:[%s169 + $0xb8] sm:$0xf]
        %v221 = vld [vmem:[%s169 + $0xbc] sm:$0xf]
        %s222 = scalar_lea.vmem %s1, 96
        %v223 = vld [vmem:[%s222] sm:$0xf]
        %v224 = vld [vmem:[%s222 + $0x4] sm:$0xf]
        %v225 = vld [vmem:[%s222 + $0x8] sm:$0xf]
        %v226 = vld [vmem:[%s222 + $0xc] sm:$0xf]
        %v227 = vld [vmem:[%s222 + $0x10] sm:$0xf]
        %v228 = vld [vmem:[%s222 + $0x14] sm:$0xf]
        %v229 = vld [vmem:[%s222 + $0x18] sm:$0xf]
        %v230 = vld [vmem:[%s222 + $0x1c] sm:$0xf]
        %v231 = vld [vmem:[%s222 + $0x20] sm:$0xf]
        %v232 = vld [vmem:[%s222 + $0x24] sm:$0xf]
        %v233 = vld [vmem:[%s222 + $0x28] sm:$0xf]
        %v234 = vld [vmem:[%s222 + $0x2c] sm:$0xf]
        %v283 = vunpack.c.l.b16 %v174
        %v284 = vunpack.c.l.b16 %v175
        %v285 = vunpack.c.l.b16 %v176
        %v286 = vunpack.c.l.b16 %v177
        %v287 = vunpack.c.l.b16 %v178
        %v288 = vunpack.c.l.b16 %v179
        %v289 = vunpack.c.l.b16 %v180
        %v290 = vunpack.c.l.b16 %v181
        %v291 = vunpack.c.l.b16 %v182
        %v292 = vunpack.c.l.b16 %v183
        %v293 = vunpack.c.l.b16 %v184
        %v294 = vunpack.c.l.b16 %v185
        %v295 = vunpack.c.l.b16 %v186
        %v296 = vunpack.c.l.b16 %v187
        %v297 = vunpack.c.l.b16 %v188
        %v298 = vunpack.c.l.b16 %v189
        %v299 = vunpack.c.l.b16 %v190
        %v300 = vunpack.c.l.b16 %v191
        %v301 = vunpack.c.l.b16 %v192
        %v302 = vunpack.c.l.b16 %v193
        %v303 = vunpack.c.l.b16 %v194
        %v304 = vunpack.c.l.b16 %v195
        %v305 = vunpack.c.l.b16 %v196
        %v306 = vunpack.c.l.b16 %v197
        %v307 = vunpack.c.l.b16 %v198
        %v308 = vunpack.c.l.b16 %v199
        %v309 = vunpack.c.l.b16 %v200
        %v310 = vunpack.c.l.b16 %v201
        %v311 = vunpack.c.l.b16 %v202
        %v312 = vunpack.c.l.b16 %v203
        %v313 = vunpack.c.l.b16 %v204
        %v314 = vunpack.c.l.b16 %v205
        %v315 = vunpack.c.l.b16 %v206
        %v316 = vunpack.c.l.b16 %v207
        %v317 = vunpack.c.l.b16 %v208
        %v318 = vunpack.c.l.b16 %v209
        %v319 = vunpack.c.l.b16 %v210
        %v320 = vunpack.c.l.b16 %v211
        %v321 = vunpack.c.l.b16 %v212
        %v322 = vunpack.c.l.b16 %v213
        %v323 = vunpack.c.l.b16 %v214
        %v324 = vunpack.c.l.b16 %v215
        %v325 = vunpack.c.l.b16 %v216
        %v326 = vunpack.c.l.b16 %v217
        %v327 = vunpack.c.l.b16 %v218
        %v328 = vunpack.c.l.b16 %v219
        %v329 = vunpack.c.l.b16 %v220
        %v330 = vunpack.c.l.b16 %v221
        %v331 = vpack.c.b16 %v284, %v283
        %v332 = vpack.c.b16 %v286, %v285
        %v333 = vpack.c.b16 %v288, %v287
        %v334 = vpack.c.b16 %v290, %v289
        %v335 = vpack.c.b16 %v292, %v291
        %v336 = vpack.c.b16 %v294, %v293
        %v337 = vpack.c.b16 %v296, %v295
        %v338 = vpack.c.b16 %v298, %v297
        %v339 = vpack.c.b16 %v300, %v299
        %v340 = vpack.c.b16 %v302, %v301
        %v341 = vpack.c.b16 %v304, %v303
        %v342 = vpack.c.b16 %v306, %v305
        %v343 = vpack.c.b16 %v308, %v307
        %v344 = vpack.c.b16 %v310, %v309
        %v345 = vpack.c.b16 %v312, %v311
        %v346 = vpack.c.b16 %v314, %v313
        %v347 = vpack.c.b16 %v316, %v315
        %v348 = vpack.c.b16 %v318, %v317
        %v349 = vpack.c.b16 %v320, %v319
        %v350 = vpack.c.b16 %v322, %v321
        %v351 = vpack.c.b16 %v324, %v323
        %v352 = vpack.c.b16 %v326, %v325
        %v353 = vpack.c.b16 %v328, %v327
        %v354 = vpack.c.b16 %v330, %v329
        %v367 = vunpack.c.l.b16 %v223
        %v368 = vunpack.c.l.b16 %v224
        %v369 = vunpack.c.l.b16 %v225
        %v370 = vunpack.c.l.b16 %v226
        %v371 = vunpack.c.l.b16 %v227
        %v372 = vunpack.c.l.b16 %v228
        %v373 = vunpack.c.l.b16 %v229
        %v374 = vunpack.c.l.b16 %v230
        %v375 = vunpack.c.l.b16 %v231
        %v376 = vunpack.c.l.b16 %v232
        %v377 = vunpack.c.l.b16 %v233
        %v378 = vunpack.c.l.b16 %v234
        %v379 = vpack.c.b16 %v368, %v367
        %v380 = vpack.c.b16 %v370, %v369
        %v381 = vpack.c.b16 %v372, %v371
        %v382 = vpack.c.b16 %v374, %v373
        %v383 = vpack.c.b16 %v376, %v375
        %v384 = vpack.c.b16 %v378, %v377
        %vm391 = vcmask 785408
        %v393 = vsel %vm391, %v331, 0
        %v396 = vsel %vm391, %v332, 0
        %v399 = vsel %vm391, %v333, 0
        %v402 = vsel %vm391, %v334, 0
        %v405 = vsel %vm391, %v335, 0
        %v408 = vsel %vm391, %v336, 0
        %v411 = vsel %vm391, %v337, 0
        %v414 = vsel %vm391, %v338, 0
        %v417 = vsel %vm391, %v339, 0
        %v420 = vsel %vm391, %v340, 0
        %v423 = vsel %vm391, %v341, 0
        %v426 = vsel %vm391, %v342, 0
        %v429 = vsel %vm391, %v343, 0
        %v432 = vsel %vm391, %v344, 0
        %v435 = vsel %vm391, %v345, 0
        %v438 = vsel %vm391, %v346, 0
        %v441 = vsel %vm391, %v347, 0
        %v444 = vsel %vm391, %v348, 0
        %v447 = vsel %vm391, %v349, 0
        %v450 = vsel %vm391, %v350, 0
        %v453 = vsel %vm391, %v351, 0
        %v456 = vsel %vm391, %v352, 0
        %v459 = vsel %vm391, %v353, 0
        %v462 = vsel %vm391, %v354, 0
        %464 = vmatprep.subr.bf16.mxu0 0
        %465 = vmatpush1.bf16.msra.mxu0 0
        %466 = vmatprep.subr.bf16.mxu0 0
        %467 = vmatpush1.bf16.msra.mxu0 0
        %468 = vmatprep.subr.bf16.mxu0 0
        %469 = vmatpush1.bf16.msra.mxu0 %v384
        %470 = vmatprep.subr.bf16.mxu0 0
        %471 = vmatpush1.bf16.msra.mxu0 %v383
        %472 = vmatprep.subr.bf16.mxu0 0
        %473 = vmatpush1.bf16.msra.mxu0 %v382
        %474 = vmatprep.subr.bf16.mxu0 0
        %475 = vmatpush1.bf16.msra.mxu0 %v381
        %476 = vmatprep.subr.bf16.mxu0 0
        %477 = vmatpush1.bf16.msra.mxu0 %v380
        %478 = vmatprep.subr.bf16.mxu0 0
        %479 = vmatpush1.bf16.msra.mxu0 %v379
        %480 = vmatprep.subr.bf16.mxu0 0
        %481 = vmatpush2.bf16.msra.mxu0 0
        %482 = vmatprep.subr.bf16.mxu0 0
        %483 = vmatpush2.bf16.msra.mxu0 0
        %484 = vmatprep.subr.bf16.mxu0 0
        %485 = vmatpush2.bf16.msra.mxu0 0
        %486 = vmatprep.subr.bf16.mxu0 0
        %487 = vmatpush2.bf16.msra.mxu0 0
        %488 = vmatprep.subr.bf16.mxu0 0
        %489 = vmatpush2.bf16.msra.mxu0 0
        %490 = vmatprep.subr.bf16.mxu0 0
        %491 = vmatpush2.bf16.msra.mxu0 0
        %492 = vmatprep.subr.bf16.mxu0 0
        %493 = vmatpush2.bf16.msra.mxu0 0
        %494 = vmatprep.subr.bf16.mxu0 0
        %495 = vmatpush2.bf16.msra.mxu0 0
        %496 = vmatprep.mubr.bf16.mxu0 0
        %497 = vmatmul.mubr.bf16.gmra.mxu0 %v393
        %v498 = vpop.f32.mrf.mxu0
        %v499 = vadd.f32 0.0, %v498
        %v500 = vpop.f32.mrf.mxu0
        %v501 = vpop.f32.mrf.mxu0
        %v502 = vadd.f32 0.0, %v501
        %v503 = vpop.f32.mrf.mxu0
        %504 = vmatprep.mubr.bf16.mxu0 0
        %505 = vmatmul.mubr.bf16.gmra.mxu0 %v396
        %v506 = vpop.f32.mrf.mxu0
        %v507 = vadd.f32 0.0, %v506
        %v508 = vpop.f32.mrf.mxu0
        %v509 = vpop.f32.mrf.mxu0
        %v510 = vadd.f32 0.0, %v509
        %v511 = vpop.f32.mrf.mxu0
        %512 = vmatprep.mubr.bf16.mxu0 0
        %513 = vmatmul.mubr.bf16.gmra.mxu0 %v399
        %v514 = vpop.f32.mrf.mxu0
        %v515 = vadd.f32 0.0, %v514
        %v516 = vpop.f32.mrf.mxu0
        %v517 = vpop.f32.mrf.mxu0
        %v518 = vadd.f32 0.0, %v517
        %v519 = vpop.f32.mrf.mxu0
        %520 = vmatprep.mubr.bf16.mxu0 0
        %521 = vmatmul.mubr.bf16.gmra.mxu0 %v402
        %v522 = vpop.f32.mrf.mxu0
        %v523 = vadd.f32 0.0, %v522
        %v524 = vpop.f32.mrf.mxu0
        %v525 = vpop.f32.mrf.mxu0
        %v526 = vadd.f32 0.0, %v525
        %v527 = vpop.f32.mrf.mxu0
        %528 = vmatprep.mubr.bf16.mxu0 0
        %529 = vmatmul.mubr.bf16.gmra.mxu0 %v405
        %v530 = vpop.f32.mrf.mxu0
        %v531 = vadd.f32 0.0, %v530
        %v532 = vpop.f32.mrf.mxu0
        %v533 = vpop.f32.mrf.mxu0
        %v534 = vadd.f32 0.0, %v533
        %v535 = vpop.f32.mrf.mxu0
        %536 = vmatprep.mubr.bf16.mxu0 0
        %537 = vmatmul.mubr.bf16.gmra.mxu0 %v408
        %v538 = vpop.f32.mrf.mxu0
        %v539 = vadd.f32 0.0, %v538
        %v540 = vpop.f32.mrf.mxu0
        %v541 = vpop.f32.mrf.mxu0
        %v542 = vadd.f32 0.0, %v541
        %v543 = vpop.f32.mrf.mxu0
        %544 = vmatprep.mubr.bf16.mxu0 0
        %545 = vmatmul.mubr.bf16.gmra.mxu0 %v411
        %v546 = vpop.f32.mrf.mxu0
        %v547 = vadd.f32 0.0, %v546
        %v548 = vpop.f32.mrf.mxu0
        %v549 = vpop.f32.mrf.mxu0
        %v550 = vadd.f32 0.0, %v549
        %v551 = vpop.f32.mrf.mxu0
        %552 = vmatprep.mubr.bf16.mxu0 0
        %553 = vmatmul.mubr.bf16.gmra.mxu0 %v414
        %v554 = vpop.f32.mrf.mxu0
        %v555 = vadd.f32 0.0, %v554
        %v556 = vpop.f32.mrf.mxu0
        %v557 = vpop.f32.mrf.mxu0
        %v558 = vadd.f32 0.0, %v557
        %v559 = vpop.f32.mrf.mxu0
        %560 = vmatprep.mubr.bf16.mxu0 0
        %561 = vmatmul.mubr.bf16.gmra.mxu0 %v417
        %v562 = vpop.f32.mrf.mxu0
        %v563 = vadd.f32 0.0, %v562
        %v564 = vpop.f32.mrf.mxu0
        %v565 = vpop.f32.mrf.mxu0
        %v566 = vadd.f32 0.0, %v565
        %v567 = vpop.f32.mrf.mxu0
        %568 = vmatprep.mubr.bf16.mxu0 0
        %569 = vmatmul.mubr.bf16.gmra.mxu0 %v420
        %v570 = vpop.f32.mrf.mxu0
        %v571 = vadd.f32 0.0, %v570
        %v572 = vpop.f32.mrf.mxu0
        %v573 = vpop.f32.mrf.mxu0
        %v574 = vadd.f32 0.0, %v573
        %v575 = vpop.f32.mrf.mxu0
        %576 = vmatprep.mubr.bf16.mxu0 0
        %577 = vmatmul.mubr.bf16.gmra.mxu0 %v423
        %v578 = vpop.f32.mrf.mxu0
        %v579 = vadd.f32 0.0, %v578
        %v580 = vpop.f32.mrf.mxu0
        %v581 = vpop.f32.mrf.mxu0
        %v582 = vadd.f32 0.0, %v581
        %v583 = vpop.f32.mrf.mxu0
        %584 = vmatprep.mubr.bf16.mxu0 0
        %585 = vmatmul.mubr.bf16.gmra.mxu0 %v426
        %v586 = vpop.f32.mrf.mxu0
        %v587 = vadd.f32 0.0, %v586
        %v588 = vpop.f32.mrf.mxu0
        %v589 = vpop.f32.mrf.mxu0
        %v590 = vadd.f32 0.0, %v589
        %v591 = vpop.f32.mrf.mxu0
        %592 = vmatprep.mubr.bf16.mxu0 0
        %593 = vmatmul.mubr.bf16.gmra.mxu0 %v429
        %v594 = vpop.f32.mrf.mxu0
        %v595 = vadd.f32 0.0, %v594
        %v596 = vpop.f32.mrf.mxu0
        %v597 = vpop.f32.mrf.mxu0
        %v598 = vadd.f32 0.0, %v597
        %v599 = vpop.f32.mrf.mxu0
        %600 = vmatprep.mubr.bf16.mxu0 0
        %601 = vmatmul.mubr.bf16.gmra.mxu0 %v432
        %v602 = vpop.f32.mrf.mxu0
        %v603 = vadd.f32 0.0, %v602
        %v604 = vpop.f32.mrf.mxu0
        %v605 = vpop.f32.mrf.mxu0
        %v606 = vadd.f32 0.0, %v605
        %v607 = vpop.f32.mrf.mxu0
        %608 = vmatprep.mubr.bf16.mxu0 0
        %609 = vmatmul.mubr.bf16.gmra.mxu0 %v435
        %v610 = vpop.f32.mrf.mxu0
        %v611 = vadd.f32 0.0, %v610
        %v612 = vpop.f32.mrf.mxu0
        %v613 = vpop.f32.mrf.mxu0
        %v614 = vadd.f32 0.0, %v613
        %v615 = vpop.f32.mrf.mxu0
        %616 = vmatprep.mubr.bf16.mxu0 0
        %617 = vmatmul.mubr.bf16.gmra.mxu0 %v438
        %v618 = vpop.f32.mrf.mxu0
        %v619 = vadd.f32 0.0, %v618
        %v620 = vpop.f32.mrf.mxu0
        %v621 = vpop.f32.mrf.mxu0
        %v622 = vadd.f32 0.0, %v621
        %v623 = vpop.f32.mrf.mxu0
        %624 = vmatprep.mubr.bf16.mxu0 0
        %625 = vmatmul.mubr.bf16.gmra.mxu0 %v441
        %v626 = vpop.f32.mrf.mxu0
        %v627 = vadd.f32 0.0, %v626
        %v628 = vpop.f32.mrf.mxu0
        %v629 = vpop.f32.mrf.mxu0
        %v630 = vadd.f32 0.0, %v629
        %v631 = vpop.f32.mrf.mxu0
        %632 = vmatprep.mubr.bf16.mxu0 0
        %633 = vmatmul.mubr.bf16.gmra.mxu0 %v444
        %v634 = vpop.f32.mrf.mxu0
        %v635 = vadd.f32 0.0, %v634
        %v636 = vpop.f32.mrf.mxu0
        %v637 = vpop.f32.mrf.mxu0
        %v638 = vadd.f32 0.0, %v637
        %v639 = vpop.f32.mrf.mxu0
        %640 = vmatprep.mubr.bf16.mxu0 0
        %641 = vmatmul.mubr.bf16.gmra.mxu0 %v447
        %v642 = vpop.f32.mrf.mxu0
        %v643 = vadd.f32 0.0, %v642
        %v644 = vpop.f32.mrf.mxu0
        %v645 = vpop.f32.mrf.mxu0
        %v646 = vadd.f32 0.0, %v645
        %v647 = vpop.f32.mrf.mxu0
        %648 = vmatprep.mubr.bf16.mxu0 0
        %649 = vmatmul.mubr.bf16.gmra.mxu0 %v450
        %v650 = vpop.f32.mrf.mxu0
        %v651 = vadd.f32 0.0, %v650
        %v652 = vpop.f32.mrf.mxu0
        %v653 = vpop.f32.mrf.mxu0
        %v654 = vadd.f32 0.0, %v653
        %v655 = vpop.f32.mrf.mxu0
        %656 = vmatprep.mubr.bf16.mxu0 0
        %657 = vmatmul.mubr.bf16.gmra.mxu0 %v453
        %v658 = vpop.f32.mrf.mxu0
        %v659 = vadd.f32 0.0, %v658
        %v660 = vpop.f32.mrf.mxu0
        %v661 = vpop.f32.mrf.mxu0
        %v662 = vadd.f32 0.0, %v661
        %v663 = vpop.f32.mrf.mxu0
        %664 = vmatprep.mubr.bf16.mxu0 0
        %665 = vmatmul.mubr.bf16.gmra.mxu0 %v456
        %v666 = vpop.f32.mrf.mxu0
        %v667 = vadd.f32 0.0, %v666
        %v668 = vpop.f32.mrf.mxu0
        %v669 = vpop.f32.mrf.mxu0
        %v670 = vadd.f32 0.0, %v669
        %v671 = vpop.f32.mrf.mxu0
        %672 = vmatprep.mubr.bf16.mxu0 0
        %673 = vmatmul.mubr.bf16.gmra.mxu0 %v459
        %v674 = vpop.f32.mrf.mxu0
        %v675 = vadd.f32 0.0, %v674
        %v676 = vpop.f32.mrf.mxu0
        %v677 = vpop.f32.mrf.mxu0
        %v678 = vadd.f32 0.0, %v677
        %v679 = vpop.f32.mrf.mxu0
        %680 = vmatprep.mubr.bf16.mxu0 0
        %681 = vmatmul.mubr.bf16.gmra.mxu0 %v462
        %v682 = vpop.f32.mrf.mxu0
        %v683 = vadd.f32 0.0, %v682
        %v684 = vpop.f32.mrf.mxu0
        %v685 = vpop.f32.mrf.mxu0
        %v686 = vadd.f32 0.0, %v685
        %v687 = vpop.f32.mrf.mxu0
        %688 = vdwg.mxu0
        %v690 = vlaneseq
        %v691 = vshrl.u32 %v690, 7
        %v692 = vsub.s32 0, %v691
        %v693 = vrot.slane %v173, %v692
        %v695 = vadd.f32 %v693, %v499
        %v696 = vadd.f32 %v693, %v502
        %v697 = vadd.f32 %v693, %v507
        %v698 = vadd.f32 %v693, %v510
        %v699 = vadd.f32 %v693, %v515
        %v700 = vadd.f32 %v693, %v518
        %v701 = vadd.f32 %v693, %v523
        %v702 = vadd.f32 %v693, %v526
        %v703 = vadd.f32 %v693, %v531
        %v704 = vadd.f32 %v693, %v534
        %v705 = vadd.f32 %v693, %v539
        %v706 = vadd.f32 %v693, %v542
        %v707 = vadd.f32 %v693, %v547
        %v708 = vadd.f32 %v693, %v550
        %v709 = vadd.f32 %v693, %v555
        %v710 = vadd.f32 %v693, %v558
        %v711 = vadd.f32 %v693, %v563
        %v712 = vadd.f32 %v693, %v566
        %v713 = vadd.f32 %v693, %v571
        %v714 = vadd.f32 %v693, %v574
        %v715 = vadd.f32 %v693, %v579
        %v716 = vadd.f32 %v693, %v582
        %v717 = vadd.f32 %v693, %v587
        %v718 = vadd.f32 %v693, %v590
        %v719 = vadd.f32 %v693, %v595
        %v720 = vadd.f32 %v693, %v598
        %v721 = vadd.f32 %v693, %v603
        %v722 = vadd.f32 %v693, %v606
        %v723 = vadd.f32 %v693, %v611
        %v724 = vadd.f32 %v693, %v614
        %v725 = vadd.f32 %v693, %v619
        %v726 = vadd.f32 %v693, %v622
        %v727 = vadd.f32 %v693, %v627
        %v728 = vadd.f32 %v693, %v630
        %v729 = vadd.f32 %v693, %v635
        %v730 = vadd.f32 %v693, %v638
        %v731 = vadd.f32 %v693, %v643
        %v732 = vadd.f32 %v693, %v646
        %v733 = vadd.f32 %v693, %v651
        %v734 = vadd.f32 %v693, %v654
        %v735 = vadd.f32 %v693, %v659
        %v736 = vadd.f32 %v693, %v662
        %v737 = vadd.f32 %v693, %v667
        %v738 = vadd.f32 %v693, %v670
        %v739 = vadd.f32 %v693, %v675
        %v740 = vadd.f32 %v693, %v678
        %v741 = vadd.f32 %v693, %v683
        %v742 = vadd.f32 %v693, %v686
        %743 = vst [vmem:[%s164] sm:$0xff] %v695
        %744 = vst [vmem:[%s164 + $0x8] sm:$0xff] %v696
        %745 = vst [vmem:[%s164 + $0x10] sm:$0xff] %v697
        %746 = vst [vmem:[%s164 + $0x18] sm:$0xff] %v698
        %747 = vst [vmem:[%s164 + $0x20] sm:$0xff] %v699
        %748 = vst [vmem:[%s164 + $0x28] sm:$0xff] %v700
        %749 = vst [vmem:[%s164 + $0x30] sm:$0xff] %v701
        %750 = vst [vmem:[%s164 + $0x38] sm:$0xff] %v702
        %751 = vst [vmem:[%s164 + $0x40] sm:$0xff] %v703
        %752 = vst [vmem:[%s164 + $0x48] sm:$0xff] %v704
        %753 = vst [vmem:[%s164 + $0x50] sm:$0xff] %v705
        %754 = vst [vmem:[%s164 + $0x58] sm:$0xff] %v706
        %755 = vst [vmem:[%s164 + $0x60] sm:$0xff] %v707
        %756 = vst [vmem:[%s164 + $0x68] sm:$0xff] %v708
        %757 = vst [vmem:[%s164 + $0x70] sm:$0xff] %v709
        %758 = vst [vmem:[%s164 + $0x78] sm:$0xff] %v710
        %759 = vst [vmem:[%s164 + $0x80] sm:$0xff] %v711
        %760 = vst [vmem:[%s164 + $0x88] sm:$0xff] %v712
        %761 = vst [vmem:[%s164 + $0x90] sm:$0xff] %v713
        %762 = vst [vmem:[%s164 + $0x98] sm:$0xff] %v714
        %763 = vst [vmem:[%s164 + $0xa0] sm:$0xff] %v715
        %764 = vst [vmem:[%s164 + $0xa8] sm:$0xff] %v716
        %765 = vst [vmem:[%s164 + $0xb0] sm:$0xff] %v717
        %766 = vst [vmem:[%s164 + $0xb8] sm:$0xff] %v718
        %767 = vst [vmem:[%s164 + $0xc0] sm:$0xff] %v719
        %768 = vst [vmem:[%s164 + $0xc8] sm:$0xff] %v720
        %769 = vst [vmem:[%s164 + $0xd0] sm:$0xff] %v721
        %770 = vst [vmem:[%s164 + $0xd8] sm:$0xff] %v722
        %771 = vst [vmem:[%s164 + $0xe0] sm:$0xff] %v723
        %772 = vst [vmem:[%s164 + $0xe8] sm:$0xff] %v724
        %773 = vst [vmem:[%s164 + $0xf0] sm:$0xff] %v725
        %774 = vst [vmem:[%s164 + $0xf8] sm:$0xff] %v726
        %775 = vst [vmem:[%s164 + $0x100] sm:$0xff] %v727
        %776 = vst [vmem:[%s164 + $0x108] sm:$0xff] %v728
        %777 = vst [vmem:[%s164 + $0x110] sm:$0xff] %v729
        %778 = vst [vmem:[%s164 + $0x118] sm:$0xff] %v730
        %779 = vst [vmem:[%s164 + $0x120] sm:$0xff] %v731
        %780 = vst [vmem:[%s164 + $0x128] sm:$0xff] %v732
        %781 = vst [vmem:[%s164 + $0x130] sm:$0xff] %v733
        %782 = vst [vmem:[%s164 + $0x138] sm:$0xff] %v734
        %783 = vst [vmem:[%s164 + $0x140] sm:$0xff] %v735
        %784 = vst [vmem:[%s164 + $0x148] sm:$0xff] %v736
        %785 = vst [vmem:[%s164 + $0x150] sm:$0xff] %v737
        %786 = vst [vmem:[%s164 + $0x158] sm:$0xff] %v738
        %787 = vst [vmem:[%s164 + $0x160] sm:$0xff] %v739
        %788 = vst [vmem:[%s164 + $0x168] sm:$0xff] %v740
        %789 = vst [vmem:[%s164 + $0x170] sm:$0xff] %v741
        %790 = vst [vmem:[%s164 + $0x178] sm:$0xff] %v742
        %v791 = vld [vmem:[%s169] sm:$0xf]
        %v792 = vld [vmem:[%s169 + $0x4] sm:$0xf]
        %v793 = vld [vmem:[%s169 + $0x8] sm:$0xf]
        %v794 = vld [vmem:[%s169 + $0xc] sm:$0xf]
        %v795 = vld [vmem:[%s169 + $0x10] sm:$0xf]
        %v796 = vld [vmem:[%s169 + $0x14] sm:$0xf]
        %v797 = vld [vmem:[%s169 + $0x18] sm:$0xf]
        %v798 = vld [vmem:[%s169 + $0x1c] sm:$0xf]
        %v799 = vld [vmem:[%s169 + $0x20] sm:$0xf]
        %v800 = vld [vmem:[%s169 + $0x24] sm:$0xf]
        %v801 = vld [vmem:[%s169 + $0x28] sm:$0xf]
        %v802 = vld [vmem:[%s169 + $0x2c] sm:$0xf]
        %v803 = vld [vmem:[%s169 + $0x30] sm:$0xf]
        %v804 = vld [vmem:[%s169 + $0x34] sm:$0xf]
        %v805 = vld [vmem:[%s169 + $0x38] sm:$0xf]
        %v806 = vld [vmem:[%s169 + $0x3c] sm:$0xf]
        %v807 = vld [vmem:[%s169 + $0x40] sm:$0xf]
        %v808 = vld [vmem:[%s169 + $0x44] sm:$0xf]
        %v809 = vld [vmem:[%s169 + $0x48] sm:$0xf]
        %v810 = vld [vmem:[%s169 + $0x4c] sm:$0xf]
        %v811 = vld [vmem:[%s169 + $0x50] sm:$0xf]
        %v812 = vld [vmem:[%s169 + $0x54] sm:$0xf]
        %v813 = vld [vmem:[%s169 + $0x58] sm:$0xf]
        %v814 = vld [vmem:[%s169 + $0x5c] sm:$0xf]
        %v815 = vld [vmem:[%s169 + $0x60] sm:$0xf]
        %v816 = vld [vmem:[%s169 + $0x64] sm:$0xf]
        %v817 = vld [vmem:[%s169 + $0x68] sm:$0xf]
        %v818 = vld [vmem:[%s169 + $0x6c] sm:$0xf]
        %v819 = vld [vmem:[%s169 + $0x70] sm:$0xf]
        %v820 = vld [vmem:[%s169 + $0x74] sm:$0xf]
        %v821 = vld [vmem:[%s169 + $0x78] sm:$0xf]
        %v822 = vld [vmem:[%s169 + $0x7c] sm:$0xf]
        %v823 = vld [vmem:[%s169 + $0x80] sm:$0xf]
        %v824 = vld [vmem:[%s169 + $0x84] sm:$0xf]
        %v825 = vld [vmem:[%s169 + $0x88] sm:$0xf]
        %v826 = vld [vmem:[%s169 + $0x8c] sm:$0xf]
        %v827 = vld [vmem:[%s169 + $0x90] sm:$0xf]
        %v828 = vld [vmem:[%s169 + $0x94] sm:$0xf]
        %v829 = vld [vmem:[%s169 + $0x98] sm:$0xf]
        %v830 = vld [vmem:[%s169 + $0x9c] sm:$0xf]
        %v831 = vld [vmem:[%s169 + $0xa0] sm:$0xf]
        %v832 = vld [vmem:[%s169 + $0xa4] sm:$0xf]
        %v833 = vld [vmem:[%s169 + $0xa8] sm:$0xf]
        %v834 = vld [vmem:[%s169 + $0xac] sm:$0xf]
        %v835 = vld [vmem:[%s169 + $0xb0] sm:$0xf]
        %v836 = vld [vmem:[%s169 + $0xb4] sm:$0xf]
        %v837 = vld [vmem:[%s169 + $0xb8] sm:$0xf]
        %v838 = vld [vmem:[%s169 + $0xbc] sm:$0xf]
        %v839 = vld [vmem:[%s1] sm:$0xf]
        %v840 = vld [vmem:[%s1 + $0x4] sm:$0xf]
        %v841 = vld [vmem:[%s1 + $0x8] sm:$0xf]
        %v842 = vld [vmem:[%s1 + $0xc] sm:$0xf]
        %v843 = vld [vmem:[%s1 + $0x10] sm:$0xf]
        %v844 = vld [vmem:[%s1 + $0x14] sm:$0xf]
        %v845 = vld [vmem:[%s1 + $0x18] sm:$0xf]
        %v846 = vld [vmem:[%s1 + $0x1c] sm:$0xf]
        %v847 = vld [vmem:[%s1 + $0x20] sm:$0xf]
        %v848 = vld [vmem:[%s1 + $0x24] sm:$0xf]
        %v849 = vld [vmem:[%s1 + $0x28] sm:$0xf]
        %v850 = vld [vmem:[%s1 + $0x2c] sm:$0xf]
        %v899 = vunpack.c.l.b16 %v791
        %v900 = vunpack.c.l.b16 %v792
        %v901 = vunpack.c.l.b16 %v793
        %v902 = vunpack.c.l.b16 %v794
        %v903 = vunpack.c.l.b16 %v795
        %v904 = vunpack.c.l.b16 %v796
        %v905 = vunpack.c.l.b16 %v797
        %v906 = vunpack.c.l.b16 %v798
        %v907 = vunpack.c.l.b16 %v799
        %v908 = vunpack.c.l.b16 %v800
        %v909 = vunpack.c.l.b16 %v801
        %v910 = vunpack.c.l.b16 %v802
        %v911 = vunpack.c.l.b16 %v803
        %v912 = vunpack.c.l.b16 %v804
        %v913 = vunpack.c.l.b16 %v805
        %v914 = vunpack.c.l.b16 %v806
        %v915 = vunpack.c.l.b16 %v807
        %v916 = vunpack.c.l.b16 %v808
        %v917 = vunpack.c.l.b16 %v809
        %v918 = vunpack.c.l.b16 %v810
        %v919 = vunpack.c.l.b16 %v811
        %v920 = vunpack.c.l.b16 %v812
        %v921 = vunpack.c.l.b16 %v813
        %v922 = vunpack.c.l.b16 %v814
        %v923 = vunpack.c.l.b16 %v815
        %v924 = vunpack.c.l.b16 %v816
        %v925 = vunpack.c.l.b16 %v817
        %v926 = vunpack.c.l.b16 %v818
        %v927 = vunpack.c.l.b16 %v819
        %v928 = vunpack.c.l.b16 %v820
        %v929 = vunpack.c.l.b16 %v821
        %v930 = vunpack.c.l.b16 %v822
        %v931 = vunpack.c.l.b16 %v823
        %v932 = vunpack.c.l.b16 %v824
        %v933 = vunpack.c.l.b16 %v825
        %v934 = vunpack.c.l.b16 %v826
        %v935 = vunpack.c.l.b16 %v827
        %v936 = vunpack.c.l.b16 %v828
        %v937 = vunpack.c.l.b16 %v829
        %v938 = vunpack.c.l.b16 %v830
        %v939 = vunpack.c.l.b16 %v831
        %v940 = vunpack.c.l.b16 %v832
        %v941 = vunpack.c.l.b16 %v833
        %v942 = vunpack.c.l.b16 %v834
        %v943 = vunpack.c.l.b16 %v835
        %v944 = vunpack.c.l.b16 %v836
        %v945 = vunpack.c.l.b16 %v837
        %v946 = vunpack.c.l.b16 %v838
        %v947 = vpack.c.b16 %v900, %v899
        %v948 = vpack.c.b16 %v902, %v901
        %v949 = vpack.c.b16 %v904, %v903
        %v950 = vpack.c.b16 %v906, %v905
        %v951 = vpack.c.b16 %v908, %v907
        %v952 = vpack.c.b16 %v910, %v909
        %v953 = vpack.c.b16 %v912, %v911
        %v954 = vpack.c.b16 %v914, %v913
        %v955 = vpack.c.b16 %v916, %v915
        %v956 = vpack.c.b16 %v918, %v917
        %v957 = vpack.c.b16 %v920, %v919
        %v958 = vpack.c.b16 %v922, %v921
        %v959 = vpack.c.b16 %v924, %v923
        %v960 = vpack.c.b16 %v926, %v925
        %v961 = vpack.c.b16 %v928, %v927
        %v962 = vpack.c.b16 %v930, %v929
        %v963 = vpack.c.b16 %v932, %v931
        %v964 = vpack.c.b16 %v934, %v933
        %v965 = vpack.c.b16 %v936, %v935
        %v966 = vpack.c.b16 %v938, %v937
        %v967 = vpack.c.b16 %v940, %v939
        %v968 = vpack.c.b16 %v942, %v941
        %v969 = vpack.c.b16 %v944, %v943
        %v970 = vpack.c.b16 %v946, %v945
        %v983 = vunpack.c.l.b16 %v839
        %v984 = vunpack.c.l.b16 %v840
        %v985 = vunpack.c.l.b16 %v841
        %v986 = vunpack.c.l.b16 %v842
        %v987 = vunpack.c.l.b16 %v843
        %v988 = vunpack.c.l.b16 %v844
        %v989 = vunpack.c.l.b16 %v845
        %v990 = vunpack.c.l.b16 %v846
        %v991 = vunpack.c.l.b16 %v847
        %v992 = vunpack.c.l.b16 %v848
        %v993 = vunpack.c.l.b16 %v849
        %v994 = vunpack.c.l.b16 %v850
        %v995 = vpack.c.b16 %v984, %v983
        %v996 = vpack.c.b16 %v986, %v985
        %v997 = vpack.c.b16 %v988, %v987
        %v998 = vpack.c.b16 %v990, %v989
        %v999 = vpack.c.b16 %v992, %v991
        %v1000 = vpack.c.b16 %v994, %v993
        %v1008 = vsel %vm391, %v947, 0
        %v1011 = vsel %vm391, %v948, 0
        %v1014 = vsel %vm391, %v949, 0
        %v1017 = vsel %vm391, %v950, 0
        %v1020 = vsel %vm391, %v951, 0
        %v1023 = vsel %vm391, %v952, 0
        %v1026 = vsel %vm391, %v953, 0
        %v1029 = vsel %vm391, %v954, 0
        %v1032 = vsel %vm391, %v955, 0
        %v1035 = vsel %vm391, %v956, 0
        %v1038 = vsel %vm391, %v957, 0
        %v1041 = vsel %vm391, %v958, 0
        %v1044 = vsel %vm391, %v959, 0
        %v1047 = vsel %vm391, %v960, 0
        %v1050 = vsel %vm391, %v961, 0
        %v1053 = vsel %vm391, %v962, 0
        %v1056 = vsel %vm391, %v963, 0
        %v1059 = vsel %vm391, %v964, 0
        %v1062 = vsel %vm391, %v965, 0
        %v1065 = vsel %vm391, %v966, 0
        %v1068 = vsel %vm391, %v967, 0
        %v1071 = vsel %vm391, %v968, 0
        %v1074 = vsel %vm391, %v969, 0
        %v1077 = vsel %vm391, %v970, 0
        %1079 = vmatprep.subr.bf16.mxu0 0
        %1080 = vmatpush1.bf16.msra.mxu0 0
        %1081 = vmatprep.subr.bf16.mxu0 0
        %1082 = vmatpush1.bf16.msra.mxu0 0
        %1083 = vmatprep.subr.bf16.mxu0 0
        %1084 = vmatpush1.bf16.msra.mxu0 %v1000
        %1085 = vmatprep.subr.bf16.mxu0 0
        %1086 = vmatpush1.bf16.msra.mxu0 %v999
        %1087 = vmatprep.subr.bf16.mxu0 0
        %1088 = vmatpush1.bf16.msra.mxu0 %v998
        %1089 = vmatprep.subr.bf16.mxu0 0
        %1090 = vmatpush1.bf16.msra.mxu0 %v997
        %1091 = vmatprep.subr.bf16.mxu0 0
        %1092 = vmatpush1.bf16.msra.mxu0 %v996
        %1093 = vmatprep.subr.bf16.mxu0 0
        %1094 = vmatpush1.bf16.msra.mxu0 %v995
        %1095 = vmatprep.subr.bf16.mxu0 0
        %1096 = vmatpush2.bf16.msra.mxu0 0
        %1097 = vmatprep.subr.bf16.mxu0 0
        %1098 = vmatpush2.bf16.msra.mxu0 0
        %1099 = vmatprep.subr.bf16.mxu0 0
        %1100 = vmatpush2.bf16.msra.mxu0 0
        %1101 = vmatprep.subr.bf16.mxu0 0
        %1102 = vmatpush2.bf16.msra.mxu0 0
        %1103 = vmatprep.subr.bf16.mxu0 0
        %1104 = vmatpush2.bf16.msra.mxu0 0
        %1105 = vmatprep.subr.bf16.mxu0 0
        %1106 = vmatpush2.bf16.msra.mxu0 0
        %1107 = vmatprep.subr.bf16.mxu0 0
        %1108 = vmatpush2.bf16.msra.mxu0 0
        %1109 = vmatprep.subr.bf16.mxu0 0
        %1110 = vmatpush2.bf16.msra.mxu0 0
        %1111 = vmatprep.mubr.bf16.mxu0 0
        %1112 = vmatmul.mubr.bf16.gmra.mxu0 %v1008
        %v1113 = vpop.f32.mrf.mxu0
        %v1114 = vadd.f32 0.0, %v1113
        %v1115 = vpop.f32.mrf.mxu0
        %v1116 = vpop.f32.mrf.mxu0
        %v1117 = vadd.f32 0.0, %v1116
        %v1118 = vpop.f32.mrf.mxu0
        %1119 = vmatprep.mubr.bf16.mxu0 0
        %1120 = vmatmul.mubr.bf16.gmra.mxu0 %v1011
        %v1121 = vpop.f32.mrf.mxu0
        %v1122 = vadd.f32 0.0, %v1121
        %v1123 = vpop.f32.mrf.mxu0
        %v1124 = vpop.f32.mrf.mxu0
        %v1125 = vadd.f32 0.0, %v1124
        %v1126 = vpop.f32.mrf.mxu0
        %1127 = vmatprep.mubr.bf16.mxu0 0
        %1128 = vmatmul.mubr.bf16.gmra.mxu0 %v1014
        %v1129 = vpop.f32.mrf.mxu0
        %v1130 = vadd.f32 0.0, %v1129
        %v1131 = vpop.f32.mrf.mxu0
        %v1132 = vpop.f32.mrf.mxu0
        %v1133 = vadd.f32 0.0, %v1132
        %v1134 = vpop.f32.mrf.mxu0
        %1135 = vmatprep.mubr.bf16.mxu0 0
        %1136 = vmatmul.mubr.bf16.gmra.mxu0 %v1017
        %v1137 = vpop.f32.mrf.mxu0
        %v1138 = vadd.f32 0.0, %v1137
        %v1139 = vpop.f32.mrf.mxu0
        %v1140 = vpop.f32.mrf.mxu0
        %v1141 = vadd.f32 0.0, %v1140
        %v1142 = vpop.f32.mrf.mxu0
        %1143 = vmatprep.mubr.bf16.mxu0 0
        %1144 = vmatmul.mubr.bf16.gmra.mxu0 %v1020
        %v1145 = vpop.f32.mrf.mxu0
        %v1146 = vadd.f32 0.0, %v1145
        %v1147 = vpop.f32.mrf.mxu0
        %v1148 = vpop.f32.mrf.mxu0
        %v1149 = vadd.f32 0.0, %v1148
        %v1150 = vpop.f32.mrf.mxu0
        %1151 = vmatprep.mubr.bf16.mxu0 0
        %1152 = vmatmul.mubr.bf16.gmra.mxu0 %v1023
        %v1153 = vpop.f32.mrf.mxu0
        %v1154 = vadd.f32 0.0, %v1153
        %v1155 = vpop.f32.mrf.mxu0
        %v1156 = vpop.f32.mrf.mxu0
        %v1157 = vadd.f32 0.0, %v1156
        %v1158 = vpop.f32.mrf.mxu0
        %1159 = vmatprep.mubr.bf16.mxu0 0
        %1160 = vmatmul.mubr.bf16.gmra.mxu0 %v1026
        %v1161 = vpop.f32.mrf.mxu0
        %v1162 = vadd.f32 0.0, %v1161
        %v1163 = vpop.f32.mrf.mxu0
        %v1164 = vpop.f32.mrf.mxu0
        %v1165 = vadd.f32 0.0, %v1164
        %v1166 = vpop.f32.mrf.mxu0
        %1167 = vmatprep.mubr.bf16.mxu0 0
        %1168 = vmatmul.mubr.bf16.gmra.mxu0 %v1029
        %v1169 = vpop.f32.mrf.mxu0
        %v1170 = vadd.f32 0.0, %v1169
        %v1171 = vpop.f32.mrf.mxu0
        %v1172 = vpop.f32.mrf.mxu0
        %v1173 = vadd.f32 0.0, %v1172
        %v1174 = vpop.f32.mrf.mxu0
        %1175 = vmatprep.mubr.bf16.mxu0 0
        %1176 = vmatmul.mubr.bf16.gmra.mxu0 %v1032
        %v1177 = vpop.f32.mrf.mxu0
        %v1178 = vadd.f32 0.0, %v1177
        %v1179 = vpop.f32.mrf.mxu0
        %v1180 = vpop.f32.mrf.mxu0
        %v1181 = vadd.f32 0.0, %v1180
        %v1182 = vpop.f32.mrf.mxu0
        %1183 = vmatprep.mubr.bf16.mxu0 0
        %1184 = vmatmul.mubr.bf16.gmra.mxu0 %v1035
        %v1185 = vpop.f32.mrf.mxu0
        %v1186 = vadd.f32 0.0, %v1185
        %v1187 = vpop.f32.mrf.mxu0
        %v1188 = vpop.f32.mrf.mxu0
        %v1189 = vadd.f32 0.0, %v1188
        %v1190 = vpop.f32.mrf.mxu0
        %1191 = vmatprep.mubr.bf16.mxu0 0
        %1192 = vmatmul.mubr.bf16.gmra.mxu0 %v1038
        %v1193 = vpop.f32.mrf.mxu0
        %v1194 = vadd.f32 0.0, %v1193
        %v1195 = vpop.f32.mrf.mxu0
        %v1196 = vpop.f32.mrf.mxu0
        %v1197 = vadd.f32 0.0, %v1196
        %v1198 = vpop.f32.mrf.mxu0
        %1199 = vmatprep.mubr.bf16.mxu0 0
        %1200 = vmatmul.mubr.bf16.gmra.mxu0 %v1041
        %v1201 = vpop.f32.mrf.mxu0
        %v1202 = vadd.f32 0.0, %v1201
        %v1203 = vpop.f32.mrf.mxu0
        %v1204 = vpop.f32.mrf.mxu0
        %v1205 = vadd.f32 0.0, %v1204
        %v1206 = vpop.f32.mrf.mxu0
        %1207 = vmatprep.mubr.bf16.mxu0 0
        %1208 = vmatmul.mubr.bf16.gmra.mxu0 %v1044
        %v1209 = vpop.f32.mrf.mxu0
        %v1210 = vadd.f32 0.0, %v1209
        %v1211 = vpop.f32.mrf.mxu0
        %v1212 = vpop.f32.mrf.mxu0
        %v1213 = vadd.f32 0.0, %v1212
        %v1214 = vpop.f32.mrf.mxu0
        %1215 = vmatprep.mubr.bf16.mxu0 0
        %1216 = vmatmul.mubr.bf16.gmra.mxu0 %v1047
        %v1217 = vpop.f32.mrf.mxu0
        %v1218 = vadd.f32 0.0, %v1217
        %v1219 = vpop.f32.mrf.mxu0
        %v1220 = vpop.f32.mrf.mxu0
        %v1221 = vadd.f32 0.0, %v1220
        %v1222 = vpop.f32.mrf.mxu0
        %1223 = vmatprep.mubr.bf16.mxu0 0
        %1224 = vmatmul.mubr.bf16.gmra.mxu0 %v1050
        %v1225 = vpop.f32.mrf.mxu0
        %v1226 = vadd.f32 0.0, %v1225
        %v1227 = vpop.f32.mrf.mxu0
        %v1228 = vpop.f32.mrf.mxu0
        %v1229 = vadd.f32 0.0, %v1228
        %v1230 = vpop.f32.mrf.mxu0
        %1231 = vmatprep.mubr.bf16.mxu0 0
        %1232 = vmatmul.mubr.bf16.gmra.mxu0 %v1053
        %v1233 = vpop.f32.mrf.mxu0
        %v1234 = vadd.f32 0.0, %v1233
        %v1235 = vpop.f32.mrf.mxu0
        %v1236 = vpop.f32.mrf.mxu0
        %v1237 = vadd.f32 0.0, %v1236
        %v1238 = vpop.f32.mrf.mxu0
        %1239 = vmatprep.mubr.bf16.mxu0 0
        %1240 = vmatmul.mubr.bf16.gmra.mxu0 %v1056
        %v1241 = vpop.f32.mrf.mxu0
        %v1242 = vadd.f32 0.0, %v1241
        %v1243 = vpop.f32.mrf.mxu0
        %v1244 = vpop.f32.mrf.mxu0
        %v1245 = vadd.f32 0.0, %v1244
        %v1246 = vpop.f32.mrf.mxu0
        %1247 = vmatprep.mubr.bf16.mxu0 0
        %1248 = vmatmul.mubr.bf16.gmra.mxu0 %v1059
        %v1249 = vpop.f32.mrf.mxu0
        %v1250 = vadd.f32 0.0, %v1249
        %v1251 = vpop.f32.mrf.mxu0
        %v1252 = vpop.f32.mrf.mxu0
        %v1253 = vadd.f32 0.0, %v1252
        %v1254 = vpop.f32.mrf.mxu0
        %1255 = vmatprep.mubr.bf16.mxu0 0
        %1256 = vmatmul.mubr.bf16.gmra.mxu0 %v1062
        %v1257 = vpop.f32.mrf.mxu0
        %v1258 = vadd.f32 0.0, %v1257
        %v1259 = vpop.f32.mrf.mxu0
        %v1260 = vpop.f32.mrf.mxu0
        %v1261 = vadd.f32 0.0, %v1260
        %v1262 = vpop.f32.mrf.mxu0
        %1263 = vmatprep.mubr.bf16.mxu0 0
        %1264 = vmatmul.mubr.bf16.gmra.mxu0 %v1065
        %v1265 = vpop.f32.mrf.mxu0
        %v1266 = vadd.f32 0.0, %v1265
        %v1267 = vpop.f32.mrf.mxu0
        %v1268 = vpop.f32.mrf.mxu0
        %v1269 = vadd.f32 0.0, %v1268
        %v1270 = vpop.f32.mrf.mxu0
        %1271 = vmatprep.mubr.bf16.mxu0 0
        %1272 = vmatmul.mubr.bf16.gmra.mxu0 %v1068
        %v1273 = vpop.f32.mrf.mxu0
        %v1274 = vadd.f32 0.0, %v1273
        %v1275 = vpop.f32.mrf.mxu0
        %v1276 = vpop.f32.mrf.mxu0
        %v1277 = vadd.f32 0.0, %v1276
        %v1278 = vpop.f32.mrf.mxu0
        %1279 = vmatprep.mubr.bf16.mxu0 0
        %1280 = vmatmul.mubr.bf16.gmra.mxu0 %v1071
        %v1281 = vpop.f32.mrf.mxu0
        %v1282 = vadd.f32 0.0, %v1281
        %v1283 = vpop.f32.mrf.mxu0
        %v1284 = vpop.f32.mrf.mxu0
        %v1285 = vadd.f32 0.0, %v1284
        %v1286 = vpop.f32.mrf.mxu0
        %1287 = vmatprep.mubr.bf16.mxu0 0
        %1288 = vmatmul.mubr.bf16.gmra.mxu0 %v1074
        %v1289 = vpop.f32.mrf.mxu0
        %v1290 = vadd.f32 0.0, %v1289
        %v1291 = vpop.f32.mrf.mxu0
        %v1292 = vpop.f32.mrf.mxu0
        %v1293 = vadd.f32 0.0, %v1292
        %v1294 = vpop.f32.mrf.mxu0
        %1295 = vmatprep.mubr.bf16.mxu0 0
        %1296 = vmatmul.mubr.bf16.gmra.mxu0 %v1077
        %v1297 = vpop.f32.mrf.mxu0
        %v1298 = vadd.f32 0.0, %v1297
        %v1299 = vpop.f32.mrf.mxu0
        %v1300 = vpop.f32.mrf.mxu0
        %v1301 = vadd.f32 0.0, %v1300
        %v1302 = vpop.f32.mrf.mxu0
        %1303 = vdwg.mxu0
        %v1304 = vld [vmem:[%s164] sm:$0xff]
        %v1305 = vld [vmem:[%s164 + $0x8] sm:$0xff]
        %v1306 = vld [vmem:[%s164 + $0x10] sm:$0xff]
        %v1307 = vld [vmem:[%s164 + $0x18] sm:$0xff]
        %v1308 = vld [vmem:[%s164 + $0x20] sm:$0xff]
        %v1309 = vld [vmem:[%s164 + $0x28] sm:$0xff]
        %v1310 = vld [vmem:[%s164 + $0x30] sm:$0xff]
        %v1311 = vld [vmem:[%s164 + $0x38] sm:$0xff]
        %v1312 = vld [vmem:[%s164 + $0x40] sm:$0xff]
        %v1313 = vld [vmem:[%s164 + $0x48] sm:$0xff]
        %v1314 = vld [vmem:[%s164 + $0x50] sm:$0xff]
        %v1315 = vld [vmem:[%s164 + $0x58] sm:$0xff]
        %v1316 = vld [vmem:[%s164 + $0x60] sm:$0xff]
        %v1317 = vld [vmem:[%s164 + $0x68] sm:$0xff]
        %v1318 = vld [vmem:[%s164 + $0x70] sm:$0xff]
        %v1319 = vld [vmem:[%s164 + $0x78] sm:$0xff]
        %v1320 = vld [vmem:[%s164 + $0x80] sm:$0xff]
        %v1321 = vld [vmem:[%s164 + $0x88] sm:$0xff]
        %v1322 = vld [vmem:[%s164 + $0x90] sm:$0xff]
        %v1323 = vld [vmem:[%s164 + $0x98] sm:$0xff]
        %v1324 = vld [vmem:[%s164 + $0xa0] sm:$0xff]
        %v1325 = vld [vmem:[%s164 + $0xa8] sm:$0xff]
        %v1326 = vld [vmem:[%s164 + $0xb0] sm:$0xff]
        %v1327 = vld [vmem:[%s164 + $0xb8] sm:$0xff]
        %v1328 = vld [vmem:[%s164 + $0xc0] sm:$0xff]
        %v1329 = vld [vmem:[%s164 + $0xc8] sm:$0xff]
        %v1330 = vld [vmem:[%s164 + $0xd0] sm:$0xff]
        %v1331 = vld [vmem:[%s164 + $0xd8] sm:$0xff]
        %v1332 = vld [vmem:[%s164 + $0xe0] sm:$0xff]
        %v1333 = vld [vmem:[%s164 + $0xe8] sm:$0xff]
        %v1334 = vld [vmem:[%s164 + $0xf0] sm:$0xff]
        %v1335 = vld [vmem:[%s164 + $0xf8] sm:$0xff]
        %v1336 = vld [vmem:[%s164 + $0x100] sm:$0xff]
        %v1337 = vld [vmem:[%s164 + $0x108] sm:$0xff]
        %v1338 = vld [vmem:[%s164 + $0x110] sm:$0xff]
        %v1339 = vld [vmem:[%s164 + $0x118] sm:$0xff]
        %v1340 = vld [vmem:[%s164 + $0x120] sm:$0xff]
        %v1341 = vld [vmem:[%s164 + $0x128] sm:$0xff]
        %v1342 = vld [vmem:[%s164 + $0x130] sm:$0xff]
        %v1343 = vld [vmem:[%s164 + $0x138] sm:$0xff]
        %v1344 = vld [vmem:[%s164 + $0x140] sm:$0xff]
        %v1345 = vld [vmem:[%s164 + $0x148] sm:$0xff]
        %v1346 = vld [vmem:[%s164 + $0x150] sm:$0xff]
        %v1347 = vld [vmem:[%s164 + $0x158] sm:$0xff]
        %v1348 = vld [vmem:[%s164 + $0x160] sm:$0xff]
        %v1349 = vld [vmem:[%s164 + $0x168] sm:$0xff]
        %v1350 = vld [vmem:[%s164 + $0x170] sm:$0xff]
        %v1351 = vld [vmem:[%s164 + $0x178] sm:$0xff]
        %v1352 = vrot.slane %v1114, 6
        %v1353 = vrot.slane %v1117, 6
        %v1354 = vrot.slane %v1122, 6
        %v1355 = vrot.slane %v1125, 6
        %v1356 = vrot.slane %v1130, 6
        %v1357 = vrot.slane %v1133, 6
        %v1358 = vrot.slane %v1138, 6
        %v1359 = vrot.slane %v1141, 6
        %v1360 = vrot.slane %v1146, 6
        %v1361 = vrot.slane %v1149, 6
        %v1362 = vrot.slane %v1154, 6
        %v1363 = vrot.slane %v1157, 6
        %v1364 = vrot.slane %v1162, 6
        %v1365 = vrot.slane %v1165, 6
        %v1366 = vrot.slane %v1170, 6
        %v1367 = vrot.slane %v1173, 6
        %v1368 = vrot.slane %v1178, 6
        %v1369 = vrot.slane %v1181, 6
        %v1370 = vrot.slane %v1186, 6
        %v1371 = vrot.slane %v1189, 6
        %v1372 = vrot.slane %v1194, 6
        %v1373 = vrot.slane %v1197, 6
        %v1374 = vrot.slane %v1202, 6
        %v1375 = vrot.slane %v1205, 6
        %v1376 = vrot.slane %v1210, 6
        %v1377 = vrot.slane %v1213, 6
        %v1378 = vrot.slane %v1218, 6
        %v1379 = vrot.slane %v1221, 6
        %v1380 = vrot.slane %v1226, 6
        %v1381 = vrot.slane %v1229, 6
        %v1382 = vrot.slane %v1234, 6
        %v1383 = vrot.slane %v1237, 6
        %v1384 = vrot.slane %v1242, 6
        %v1385 = vrot.slane %v1245, 6
        %v1386 = vrot.slane %v1250, 6
        %v1387 = vrot.slane %v1253, 6
        %v1388 = vrot.slane %v1258, 6
        %v1389 = vrot.slane %v1261, 6
        %v1390 = vrot.slane %v1266, 6
        %v1391 = vrot.slane %v1269, 6
        %v1392 = vrot.slane %v1274, 6
        %v1393 = vrot.slane %v1277, 6
        %v1394 = vrot.slane %v1282, 6
        %v1395 = vrot.slane %v1285, 6
        %v1396 = vrot.slane %v1290, 6
        %v1397 = vrot.slane %v1293, 6
        %v1398 = vrot.slane %v1298, 6
        %v1399 = vrot.slane %v1301, 6
        %v1400 = vlaneseq
        %v1401 = vshrl.u32 %v1400, 7
        %vm1402 = vcmp.lt.s32.totalorder %v1401, 2
        %v1403 = vsel %vm1402, %v1398, %v1399
        %v1404 = vsel %vm1402, %v1397, %v1398
        %v1405 = vsel %vm1402, %v1396, %v1397
        %v1406 = vsel %vm1402, %v1395, %v1396
        %v1407 = vsel %vm1402, %v1394, %v1395
        %v1408 = vsel %vm1402, %v1393, %v1394
        %v1409 = vsel %vm1402, %v1392, %v1393
        %v1410 = vsel %vm1402, %v1391, %v1392
        %v1411 = vsel %vm1402, %v1390, %v1391
        %v1412 = vsel %vm1402, %v1389, %v1390
        %v1413 = vsel %vm1402, %v1388, %v1389
        %v1414 = vsel %vm1402, %v1387, %v1388
        %v1415 = vsel %vm1402, %v1386, %v1387
        %v1416 = vsel %vm1402, %v1385, %v1386
        %v1417 = vsel %vm1402, %v1384, %v1385
        %v1418 = vsel %vm1402, %v1383, %v1384
        %v1419 = vsel %vm1402, %v1382, %v1383
        %v1420 = vsel %vm1402, %v1381, %v1382
        %v1421 = vsel %vm1402, %v1380, %v1381
        %v1422 = vsel %vm1402, %v1379, %v1380
        %v1423 = vsel %vm1402, %v1378, %v1379
        %v1424 = vsel %vm1402, %v1377, %v1378
        %v1425 = vsel %vm1402, %v1376, %v1377
        %v1426 = vsel %vm1402, %v1375, %v1376
        %v1427 = vsel %vm1402, %v1374, %v1375
        %v1428 = vsel %vm1402, %v1373, %v1374
        %v1429 = vsel %vm1402, %v1372, %v1373
        %v1430 = vsel %vm1402, %v1371, %v1372
        %v1431 = vsel %vm1402, %v1370, %v1371
        %v1432 = vsel %vm1402, %v1369, %v1370
        %v1433 = vsel %vm1402, %v1368, %v1369
        %v1434 = vsel %vm1402, %v1367, %v1368
        %v1435 = vsel %vm1402, %v1366, %v1367
        %v1436 = vsel %vm1402, %v1365, %v1366
        %v1437 = vsel %vm1402, %v1364, %v1365
        %v1438 = vsel %vm1402, %v1363, %v1364
        %v1439 = vsel %vm1402, %v1362, %v1363
        %v1440 = vsel %vm1402, %v1361, %v1362
        %v1441 = vsel %vm1402, %v1360, %v1361
        %v1442 = vsel %vm1402, %v1359, %v1360
        %v1443 = vsel %vm1402, %v1358, %v1359
        %v1444 = vsel %vm1402, %v1357, %v1358
        %v1445 = vsel %vm1402, %v1356, %v1357
        %v1446 = vsel %vm1402, %v1355, %v1356
        %v1447 = vsel %vm1402, %v1354, %v1355
        %v1448 = vsel %vm1402, %v1353, %v1354
        %v1449 = vsel %vm1402, %v1352, %v1353
        %v1450 = vsel %vm1402, %v1399, %v1352
        %v1451 = vadd.f32 %v1304, %v1450
        %v1452 = vadd.f32 %v1305, %v1449
        %v1453 = vadd.f32 %v1306, %v1448
        %v1454 = vadd.f32 %v1307, %v1447
        %v1455 = vadd.f32 %v1308, %v1446
        %v1456 = vadd.f32 %v1309, %v1445
        %v1457 = vadd.f32 %v1310, %v1444
        %v1458 = vadd.f32 %v1311, %v1443
        %v1459 = vadd.f32 %v1312, %v1442
        %v1460 = vadd.f32 %v1313, %v1441
        %v1461 = vadd.f32 %v1314, %v1440
        %v1462 = vadd.f32 %v1315, %v1439
        %v1463 = vadd.f32 %v1316, %v1438
        %v1464 = vadd.f32 %v1317, %v1437
        %v1465 = vadd.f32 %v1318, %v1436
        %v1466 = vadd.f32 %v1319, %v1435
        %v1467 = vadd.f32 %v1320, %v1434
        %v1468 = vadd.f32 %v1321, %v1433
        %v1469 = vadd.f32 %v1322, %v1432
        %v1470 = vadd.f32 %v1323, %v1431
        %v1471 = vadd.f32 %v1324, %v1430
        %v1472 = vadd.f32 %v1325, %v1429
        %v1473 = vadd.f32 %v1326, %v1428
        %v1474 = vadd.f32 %v1327, %v1427
        %v1475 = vadd.f32 %v1328, %v1426
        %v1476 = vadd.f32 %v1329, %v1425
        %v1477 = vadd.f32 %v1330, %v1424
        %v1478 = vadd.f32 %v1331, %v1423
        %v1479 = vadd.f32 %v1332, %v1422
        %v1480 = vadd.f32 %v1333, %v1421
        %v1481 = vadd.f32 %v1334, %v1420
        %v1482 = vadd.f32 %v1335, %v1419
        %v1483 = vadd.f32 %v1336, %v1418
        %v1484 = vadd.f32 %v1337, %v1417
        %v1485 = vadd.f32 %v1338, %v1416
        %v1486 = vadd.f32 %v1339, %v1415
        %v1487 = vadd.f32 %v1340, %v1414
        %v1488 = vadd.f32 %v1341, %v1413
        %v1489 = vadd.f32 %v1342, %v1412
        %v1490 = vadd.f32 %v1343, %v1411
        %v1491 = vadd.f32 %v1344, %v1410
        %v1492 = vadd.f32 %v1345, %v1409
        %v1493 = vadd.f32 %v1346, %v1408
        %v1494 = vadd.f32 %v1347, %v1407
        %v1495 = vadd.f32 %v1348, %v1406
        %v1496 = vadd.f32 %v1349, %v1405
        %v1497 = vadd.f32 %v1350, %v1404
        %v1498 = vadd.f32 %v1351, %v1403
        %1499 = vst [vmem:[%s164] sm:$0xff] %v1451
        %1500 = vst [vmem:[%s164 + $0x8] sm:$0xff] %v1452
        %1501 = vst [vmem:[%s164 + $0x10] sm:$0xff] %v1453
        %1502 = vst [vmem:[%s164 + $0x18] sm:$0xff] %v1454
        %1503 = vst [vmem:[%s164 + $0x20] sm:$0xff] %v1455
        %1504 = vst [vmem:[%s164 + $0x28] sm:$0xff] %v1456
        %1505 = vst [vmem:[%s164 + $0x30] sm:$0xff] %v1457
        %1506 = vst [vmem:[%s164 + $0x38] sm:$0xff] %v1458
        %1507 = vst [vmem:[%s164 + $0x40] sm:$0xff] %v1459
        %1508 = vst [vmem:[%s164 + $0x48] sm:$0xff] %v1460
        %1509 = vst [vmem:[%s164 + $0x50] sm:$0xff] %v1461
        %1510 = vst [vmem:[%s164 + $0x58] sm:$0xff] %v1462
        %1511 = vst [vmem:[%s164 + $0x60] sm:$0xff] %v1463
        %1512 = vst [vmem:[%s164 + $0x68] sm:$0xff] %v1464
        %1513 = vst [vmem:[%s164 + $0x70] sm:$0xff] %v1465
        %1514 = vst [vmem:[%s164 + $0x78] sm:$0xff] %v1466
        %1515 = vst [vmem:[%s164 + $0x80] sm:$0xff] %v1467
        %1516 = vst [vmem:[%s164 + $0x88] sm:$0xff] %v1468
        %1517 = vst [vmem:[%s164 + $0x90] sm:$0xff] %v1469
        %1518 = vst [vmem:[%s164 + $0x98] sm:$0xff] %v1470
        %1519 = vst [vmem:[%s164 + $0xa0] sm:$0xff] %v1471
        %1520 = vst [vmem:[%s164 + $0xa8] sm:$0xff] %v1472
        %1521 = vst [vmem:[%s164 + $0xb0] sm:$0xff] %v1473
        %1522 = vst [vmem:[%s164 + $0xb8] sm:$0xff] %v1474
        %1523 = vst [vmem:[%s164 + $0xc0] sm:$0xff] %v1475
        %1524 = vst [vmem:[%s164 + $0xc8] sm:$0xff] %v1476
        %1525 = vst [vmem:[%s164 + $0xd0] sm:$0xff] %v1477
        %1526 = vst [vmem:[%s164 + $0xd8] sm:$0xff] %v1478
        %1527 = vst [vmem:[%s164 + $0xe0] sm:$0xff] %v1479
        %1528 = vst [vmem:[%s164 + $0xe8] sm:$0xff] %v1480
        %1529 = vst [vmem:[%s164 + $0xf0] sm:$0xff] %v1481
        %1530 = vst [vmem:[%s164 + $0xf8] sm:$0xff] %v1482
        %1531 = vst [vmem:[%s164 + $0x100] sm:$0xff] %v1483
        %1532 = vst [vmem:[%s164 + $0x108] sm:$0xff] %v1484
        %1533 = vst [vmem:[%s164 + $0x110] sm:$0xff] %v1485
        %1534 = vst [vmem:[%s164 + $0x118] sm:$0xff] %v1486
        %1535 = vst [vmem:[%s164 + $0x120] sm:$0xff] %v1487
        %1536 = vst [vmem:[%s164 + $0x128] sm:$0xff] %v1488
        %1537 = vst [vmem:[%s164 + $0x130] sm:$0xff] %v1489
        %1538 = vst [vmem:[%s164 + $0x138] sm:$0xff] %v1490
        %1539 = vst [vmem:[%s164 + $0x140] sm:$0xff] %v1491
        %1540 = vst [vmem:[%s164 + $0x148] sm:$0xff] %v1492
        %1541 = vst [vmem:[%s164 + $0x150] sm:$0xff] %v1493
        %1542 = vst [vmem:[%s164 + $0x158] sm:$0xff] %v1494
        %1543 = vst [vmem:[%s164 + $0x160] sm:$0xff] %v1495
        %1544 = vst [vmem:[%s164 + $0x168] sm:$0xff] %v1496
        %1545 = vst [vmem:[%s164 + $0x170] sm:$0xff] %v1497
        %1546 = vst [vmem:[%s164 + $0x178] sm:$0xff] %v1498
        %v1547 = vld [vmem:[%s169] sm:$0xf]
        %v1548 = vld [vmem:[%s169 + $0x4] sm:$0xf]
        %v1549 = vld [vmem:[%s169 + $0x8] sm:$0xf]
        %v1550 = vld [vmem:[%s169 + $0xc] sm:$0xf]
        %v1551 = vld [vmem:[%s169 + $0x10] sm:$0xf]
        %v1552 = vld [vmem:[%s169 + $0x14] sm:$0xf]
        %v1553 = vld [vmem:[%s169 + $0x18] sm:$0xf]
        %v1554 = vld [vmem:[%s169 + $0x1c] sm:$0xf]
        %v1555 = vld [vmem:[%s169 + $0x20] sm:$0xf]
        %v1556 = vld [vmem:[%s169 + $0x24] sm:$0xf]
        %v1557 = vld [vmem:[%s169 + $0x28] sm:$0xf]
        %v1558 = vld [vmem:[%s169 + $0x2c] sm:$0xf]
        %v1559 = vld [vmem:[%s169 + $0x30] sm:$0xf]
        %v1560 = vld [vmem:[%s169 + $0x34] sm:$0xf]
        %v1561 = vld [vmem:[%s169 + $0x38] sm:$0xf]
        %v1562 = vld [vmem:[%s169 + $0x3c] sm:$0xf]
        %v1563 = vld [vmem:[%s169 + $0x40] sm:$0xf]
        %v1564 = vld [vmem:[%s169 + $0x44] sm:$0xf]
        %v1565 = vld [vmem:[%s169 + $0x48] sm:$0xf]
        %v1566 = vld [vmem:[%s169 + $0x4c] sm:$0xf]
        %v1567 = vld [vmem:[%s169 + $0x50] sm:$0xf]
        %v1568 = vld [vmem:[%s169 + $0x54] sm:$0xf]
        %v1569 = vld [vmem:[%s169 + $0x58] sm:$0xf]
        %v1570 = vld [vmem:[%s169 + $0x5c] sm:$0xf]
        %v1571 = vld [vmem:[%s169 + $0x60] sm:$0xf]
        %v1572 = vld [vmem:[%s169 + $0x64] sm:$0xf]
        %v1573 = vld [vmem:[%s169 + $0x68] sm:$0xf]
        %v1574 = vld [vmem:[%s169 + $0x6c] sm:$0xf]
        %v1575 = vld [vmem:[%s169 + $0x70] sm:$0xf]
        %v1576 = vld [vmem:[%s169 + $0x74] sm:$0xf]
        %v1577 = vld [vmem:[%s169 + $0x78] sm:$0xf]
        %v1578 = vld [vmem:[%s169 + $0x7c] sm:$0xf]
        %v1579 = vld [vmem:[%s169 + $0x80] sm:$0xf]
        %v1580 = vld [vmem:[%s169 + $0x84] sm:$0xf]
        %v1581 = vld [vmem:[%s169 + $0x88] sm:$0xf]
        %v1582 = vld [vmem:[%s169 + $0x8c] sm:$0xf]
        %v1583 = vld [vmem:[%s169 + $0x90] sm:$0xf]
        %v1584 = vld [vmem:[%s169 + $0x94] sm:$0xf]
        %v1585 = vld [vmem:[%s169 + $0x98] sm:$0xf]
        %v1586 = vld [vmem:[%s169 + $0x9c] sm:$0xf]
        %v1587 = vld [vmem:[%s169 + $0xa0] sm:$0xf]
        %v1588 = vld [vmem:[%s169 + $0xa4] sm:$0xf]
        %v1589 = vld [vmem:[%s169 + $0xa8] sm:$0xf]
        %v1590 = vld [vmem:[%s169 + $0xac] sm:$0xf]
        %v1591 = vld [vmem:[%s169 + $0xb0] sm:$0xf]
        %v1592 = vld [vmem:[%s169 + $0xb4] sm:$0xf]
        %v1593 = vld [vmem:[%s169 + $0xb8] sm:$0xf]
        %v1594 = vld [vmem:[%s169 + $0xbc] sm:$0xf]
        %s1595 = scalar_lea.vmem %s1, 48
        %v1596 = vld [vmem:[%s1595] sm:$0xf]
        %v1597 = vld [vmem:[%s1595 + $0x4] sm:$0xf]
        %v1598 = vld [vmem:[%s1595 + $0x8] sm:$0xf]
        %v1599 = vld [vmem:[%s1595 + $0xc] sm:$0xf]
        %v1600 = vld [vmem:[%s1595 + $0x10] sm:$0xf]
        %v1601 = vld [vmem:[%s1595 + $0x14] sm:$0xf]
        %v1602 = vld [vmem:[%s1595 + $0x18] sm:$0xf]
        %v1603 = vld [vmem:[%s1595 + $0x1c] sm:$0xf]
        %v1604 = vld [vmem:[%s1595 + $0x20] sm:$0xf]
        %v1605 = vld [vmem:[%s1595 + $0x24] sm:$0xf]
        %v1606 = vld [vmem:[%s1595 + $0x28] sm:$0xf]
        %v1607 = vld [vmem:[%s1595 + $0x2c] sm:$0xf]
        %v1656 = vunpack.c.l.b16 %v1547
        %v1657 = vunpack.c.l.b16 %v1548
        %v1658 = vunpack.c.l.b16 %v1549
        %v1659 = vunpack.c.l.b16 %v1550
        %v1660 = vunpack.c.l.b16 %v1551
        %v1661 = vunpack.c.l.b16 %v1552
        %v1662 = vunpack.c.l.b16 %v1553
        %v1663 = vunpack.c.l.b16 %v1554
        %v1664 = vunpack.c.l.b16 %v1555
        %v1665 = vunpack.c.l.b16 %v1556
        %v1666 = vunpack.c.l.b16 %v1557
        %v1667 = vunpack.c.l.b16 %v1558
        %v1668 = vunpack.c.l.b16 %v1559
        %v1669 = vunpack.c.l.b16 %v1560
        %v1670 = vunpack.c.l.b16 %v1561
        %v1671 = vunpack.c.l.b16 %v1562
        %v1672 = vunpack.c.l.b16 %v1563
        %v1673 = vunpack.c.l.b16 %v1564
        %v1674 = vunpack.c.l.b16 %v1565
        %v1675 = vunpack.c.l.b16 %v1566
        %v1676 = vunpack.c.l.b16 %v1567
        %v1677 = vunpack.c.l.b16 %v1568
        %v1678 = vunpack.c.l.b16 %v1569
        %v1679 = vunpack.c.l.b16 %v1570
        %v1680 = vunpack.c.l.b16 %v1571
        %v1681 = vunpack.c.l.b16 %v1572
        %v1682 = vunpack.c.l.b16 %v1573
        %v1683 = vunpack.c.l.b16 %v1574
        %v1684 = vunpack.c.l.b16 %v1575
        %v1685 = vunpack.c.l.b16 %v1576
        %v1686 = vunpack.c.l.b16 %v1577
        %v1687 = vunpack.c.l.b16 %v1578
        %v1688 = vunpack.c.l.b16 %v1579
        %v1689 = vunpack.c.l.b16 %v1580
        %v1690 = vunpack.c.l.b16 %v1581
        %v1691 = vunpack.c.l.b16 %v1582
        %v1692 = vunpack.c.l.b16 %v1583
        %v1693 = vunpack.c.l.b16 %v1584
        %v1694 = vunpack.c.l.b16 %v1585
        %v1695 = vunpack.c.l.b16 %v1586
        %v1696 = vunpack.c.l.b16 %v1587
        %v1697 = vunpack.c.l.b16 %v1588
        %v1698 = vunpack.c.l.b16 %v1589
        %v1699 = vunpack.c.l.b16 %v1590
        %v1700 = vunpack.c.l.b16 %v1591
        %v1701 = vunpack.c.l.b16 %v1592
        %v1702 = vunpack.c.l.b16 %v1593
        %v1703 = vunpack.c.l.b16 %v1594
        %v1704 = vpack.c.b16 %v1657, %v1656
        %v1705 = vpack.c.b16 %v1659, %v1658
        %v1706 = vpack.c.b16 %v1661, %v1660
        %v1707 = vpack.c.b16 %v1663, %v1662
        %v1708 = vpack.c.b16 %v1665, %v1664
        %v1709 = vpack.c.b16 %v1667, %v1666
        %v1710 = vpack.c.b16 %v1669, %v1668
        %v1711 = vpack.c.b16 %v1671, %v1670
        %v1712 = vpack.c.b16 %v1673, %v1672
        %v1713 = vpack.c.b16 %v1675, %v1674
        %v1714 = vpack.c.b16 %v1677, %v1676
        %v1715 = vpack.c.b16 %v1679, %v1678
        %v1716 = vpack.c.b16 %v1681, %v1680
        %v1717 = vpack.c.b16 %v1683, %v1682
        %v1718 = vpack.c.b16 %v1685, %v1684
        %v1719 = vpack.c.b16 %v1687, %v1686
        %v1720 = vpack.c.b16 %v1689, %v1688
        %v1721 = vpack.c.b16 %v1691, %v1690
        %v1722 = vpack.c.b16 %v1693, %v1692
        %v1723 = vpack.c.b16 %v1695, %v1694
        %v1724 = vpack.c.b16 %v1697, %v1696
        %v1725 = vpack.c.b16 %v1699, %v1698
        %v1726 = vpack.c.b16 %v1701, %v1700
        %v1727 = vpack.c.b16 %v1703, %v1702
        %v1740 = vunpack.c.l.b16 %v1596
        %v1741 = vunpack.c.l.b16 %v1597
        %v1742 = vunpack.c.l.b16 %v1598
        %v1743 = vunpack.c.l.b16 %v1599
        %v1744 = vunpack.c.l.b16 %v1600
        %v1745 = vunpack.c.l.b16 %v1601
        %v1746 = vunpack.c.l.b16 %v1602
        %v1747 = vunpack.c.l.b16 %v1603
        %v1748 = vunpack.c.l.b16 %v1604
        %v1749 = vunpack.c.l.b16 %v1605
        %v1750 = vunpack.c.l.b16 %v1606
        %v1751 = vunpack.c.l.b16 %v1607
        %v1752 = vpack.c.b16 %v1741, %v1740
        %v1753 = vpack.c.b16 %v1743, %v1742
        %v1754 = vpack.c.b16 %v1745, %v1744
        %v1755 = vpack.c.b16 %v1747, %v1746
        %v1756 = vpack.c.b16 %v1749, %v1748
        %v1757 = vpack.c.b16 %v1751, %v1750
        %v1765 = vsel %vm391, %v1704, 0
        %v1768 = vsel %vm391, %v1705, 0
        %v1771 = vsel %vm391, %v1706, 0
        %v1774 = vsel %vm391, %v1707, 0
        %v1777 = vsel %vm391, %v1708, 0
        %v1780 = vsel %vm391, %v1709, 0
        %v1783 = vsel %vm391, %v1710, 0
        %v1786 = vsel %vm391, %v1711, 0
        %v1789 = vsel %vm391, %v1712, 0
        %v1792 = vsel %vm391, %v1713, 0
        %v1795 = vsel %vm391, %v1714, 0
        %v1798 = vsel %vm391, %v1715, 0
        %v1801 = vsel %vm391, %v1716, 0
        %v1804 = vsel %vm391, %v1717, 0
        %v1807 = vsel %vm391, %v1718, 0
        %v1810 = vsel %vm391, %v1719, 0
        %v1813 = vsel %vm391, %v1720, 0
        %v1816 = vsel %vm391, %v1721, 0
        %v1819 = vsel %vm391, %v1722, 0
        %v1822 = vsel %vm391, %v1723, 0
        %v1825 = vsel %vm391, %v1724, 0
        %v1828 = vsel %vm391, %v1725, 0
        %v1831 = vsel %vm391, %v1726, 0
        %v1834 = vsel %vm391, %v1727, 0
        %1836 = vmatprep.subr.bf16.mxu0 0
        %1837 = vmatpush1.bf16.msra.mxu0 0
        %1838 = vmatprep.subr.bf16.mxu0 0
        %1839 = vmatpush1.bf16.msra.mxu0 0
        %1840 = vmatprep.subr.bf16.mxu0 0
        %1841 = vmatpush1.bf16.msra.mxu0 %v1757
        %1842 = vmatprep.subr.bf16.mxu0 0
        %1843 = vmatpush1.bf16.msra.mxu0 %v1756
        %1844 = vmatprep.subr.bf16.mxu0 0
        %1845 = vmatpush1.bf16.msra.mxu0 %v1755
        %1846 = vmatprep.subr.bf16.mxu0 0
        %1847 = vmatpush1.bf16.msra.mxu0 %v1754
        %1848 = vmatprep.subr.bf16.mxu0 0
        %1849 = vmatpush1.bf16.msra.mxu0 %v1753
        %1850 = vmatprep.subr.bf16.mxu0 0
        %1851 = vmatpush1.bf16.msra.mxu0 %v1752
        %1852 = vmatprep.subr.bf16.mxu0 0
        %1853 = vmatpush2.bf16.msra.mxu0 0
        %1854 = vmatprep.subr.bf16.mxu0 0
        %1855 = vmatpush2.bf16.msra.mxu0 0
        %1856 = vmatprep.subr.bf16.mxu0 0
        %1857 = vmatpush2.bf16.msra.mxu0 0
        %1858 = vmatprep.subr.bf16.mxu0 0
        %1859 = vmatpush2.bf16.msra.mxu0 0
        %1860 = vmatprep.subr.bf16.mxu0 0
        %1861 = vmatpush2.bf16.msra.mxu0 0
        %1862 = vmatprep.subr.bf16.mxu0 0
        %1863 = vmatpush2.bf16.msra.mxu0 0
        %1864 = vmatprep.subr.bf16.mxu0 0
        %1865 = vmatpush2.bf16.msra.mxu0 0
        %1866 = vmatprep.subr.bf16.mxu0 0
        %1867 = vmatpush2.bf16.msra.mxu0 0
        %1868 = vmatprep.mubr.bf16.mxu0 0
        %1869 = vmatmul.mubr.bf16.gmra.mxu0 %v1765
        %v1870 = vpop.f32.mrf.mxu0
        %v1871 = vadd.f32 0.0, %v1870
        %v1872 = vpop.f32.mrf.mxu0
        %v1873 = vpop.f32.mrf.mxu0
        %v1874 = vadd.f32 0.0, %v1873
        %v1875 = vpop.f32.mrf.mxu0
        %1876 = vmatprep.mubr.bf16.mxu0 0
        %1877 = vmatmul.mubr.bf16.gmra.mxu0 %v1768
        %v1878 = vpop.f32.mrf.mxu0
        %v1879 = vadd.f32 0.0, %v1878
        %v1880 = vpop.f32.mrf.mxu0
        %v1881 = vpop.f32.mrf.mxu0
        %v1882 = vadd.f32 0.0, %v1881
        %v1883 = vpop.f32.mrf.mxu0
        %1884 = vmatprep.mubr.bf16.mxu0 0
        %1885 = vmatmul.mubr.bf16.gmra.mxu0 %v1771
        %v1886 = vpop.f32.mrf.mxu0
        %v1887 = vadd.f32 0.0, %v1886
        %v1888 = vpop.f32.mrf.mxu0
        %v1889 = vpop.f32.mrf.mxu0
        %v1890 = vadd.f32 0.0, %v1889
        %v1891 = vpop.f32.mrf.mxu0
        %1892 = vmatprep.mubr.bf16.mxu0 0
        %1893 = vmatmul.mubr.bf16.gmra.mxu0 %v1774
        %v1894 = vpop.f32.mrf.mxu0
        %v1895 = vadd.f32 0.0, %v1894
        %v1896 = vpop.f32.mrf.mxu0
        %v1897 = vpop.f32.mrf.mxu0
        %v1898 = vadd.f32 0.0, %v1897
        %v1899 = vpop.f32.mrf.mxu0
        %1900 = vmatprep.mubr.bf16.mxu0 0
        %1901 = vmatmul.mubr.bf16.gmra.mxu0 %v1777
        %v1902 = vpop.f32.mrf.mxu0
        %v1903 = vadd.f32 0.0, %v1902
        %v1904 = vpop.f32.mrf.mxu0
        %v1905 = vpop.f32.mrf.mxu0
        %v1906 = vadd.f32 0.0, %v1905
        %v1907 = vpop.f32.mrf.mxu0
        %1908 = vmatprep.mubr.bf16.mxu0 0
        %1909 = vmatmul.mubr.bf16.gmra.mxu0 %v1780
        %v1910 = vpop.f32.mrf.mxu0
        %v1911 = vadd.f32 0.0, %v1910
        %v1912 = vpop.f32.mrf.mxu0
        %v1913 = vpop.f32.mrf.mxu0
        %v1914 = vadd.f32 0.0, %v1913
        %v1915 = vpop.f32.mrf.mxu0
        %1916 = vmatprep.mubr.bf16.mxu0 0
        %1917 = vmatmul.mubr.bf16.gmra.mxu0 %v1783
        %v1918 = vpop.f32.mrf.mxu0
        %v1919 = vadd.f32 0.0, %v1918
        %v1920 = vpop.f32.mrf.mxu0
        %v1921 = vpop.f32.mrf.mxu0
        %v1922 = vadd.f32 0.0, %v1921
        %v1923 = vpop.f32.mrf.mxu0
        %1924 = vmatprep.mubr.bf16.mxu0 0
        %1925 = vmatmul.mubr.bf16.gmra.mxu0 %v1786
        %v1926 = vpop.f32.mrf.mxu0
        %v1927 = vadd.f32 0.0, %v1926
        %v1928 = vpop.f32.mrf.mxu0
        %v1929 = vpop.f32.mrf.mxu0
        %v1930 = vadd.f32 0.0, %v1929
        %v1931 = vpop.f32.mrf.mxu0
        %1932 = vmatprep.mubr.bf16.mxu0 0
        %1933 = vmatmul.mubr.bf16.gmra.mxu0 %v1789
        %v1934 = vpop.f32.mrf.mxu0
        %v1935 = vadd.f32 0.0, %v1934
        %v1936 = vpop.f32.mrf.mxu0
        %v1937 = vpop.f32.mrf.mxu0
        %v1938 = vadd.f32 0.0, %v1937
        %v1939 = vpop.f32.mrf.mxu0
        %1940 = vmatprep.mubr.bf16.mxu0 0
        %1941 = vmatmul.mubr.bf16.gmra.mxu0 %v1792
        %v1942 = vpop.f32.mrf.mxu0
        %v1943 = vadd.f32 0.0, %v1942
        %v1944 = vpop.f32.mrf.mxu0
        %v1945 = vpop.f32.mrf.mxu0
        %v1946 = vadd.f32 0.0, %v1945
        %v1947 = vpop.f32.mrf.mxu0
        %1948 = vmatprep.mubr.bf16.mxu0 0
        %1949 = vmatmul.mubr.bf16.gmra.mxu0 %v1795
        %v1950 = vpop.f32.mrf.mxu0
        %v1951 = vadd.f32 0.0, %v1950
        %v1952 = vpop.f32.mrf.mxu0
        %v1953 = vpop.f32.mrf.mxu0
        %v1954 = vadd.f32 0.0, %v1953
        %v1955 = vpop.f32.mrf.mxu0
        %1956 = vmatprep.mubr.bf16.mxu0 0
        %1957 = vmatmul.mubr.bf16.gmra.mxu0 %v1798
        %v1958 = vpop.f32.mrf.mxu0
        %v1959 = vadd.f32 0.0, %v1958
        %v1960 = vpop.f32.mrf.mxu0
        %v1961 = vpop.f32.mrf.mxu0
        %v1962 = vadd.f32 0.0, %v1961
        %v1963 = vpop.f32.mrf.mxu0
        %1964 = vmatprep.mubr.bf16.mxu0 0
        %1965 = vmatmul.mubr.bf16.gmra.mxu0 %v1801
        %v1966 = vpop.f32.mrf.mxu0
        %v1967 = vadd.f32 0.0, %v1966
        %v1968 = vpop.f32.mrf.mxu0
        %v1969 = vpop.f32.mrf.mxu0
        %v1970 = vadd.f32 0.0, %v1969
        %v1971 = vpop.f32.mrf.mxu0
        %1972 = vmatprep.mubr.bf16.mxu0 0
        %1973 = vmatmul.mubr.bf16.gmra.mxu0 %v1804
        %v1974 = vpop.f32.mrf.mxu0
        %v1975 = vadd.f32 0.0, %v1974
        %v1976 = vpop.f32.mrf.mxu0
        %v1977 = vpop.f32.mrf.mxu0
        %v1978 = vadd.f32 0.0, %v1977
        %v1979 = vpop.f32.mrf.mxu0
        %1980 = vmatprep.mubr.bf16.mxu0 0
        %1981 = vmatmul.mubr.bf16.gmra.mxu0 %v1807
        %v1982 = vpop.f32.mrf.mxu0
        %v1983 = vadd.f32 0.0, %v1982
        %v1984 = vpop.f32.mrf.mxu0
        %v1985 = vpop.f32.mrf.mxu0
        %v1986 = vadd.f32 0.0, %v1985
        %v1987 = vpop.f32.mrf.mxu0
        %1988 = vmatprep.mubr.bf16.mxu0 0
        %1989 = vmatmul.mubr.bf16.gmra.mxu0 %v1810
        %v1990 = vpop.f32.mrf.mxu0
        %v1991 = vadd.f32 0.0, %v1990
        %v1992 = vpop.f32.mrf.mxu0
        %v1993 = vpop.f32.mrf.mxu0
        %v1994 = vadd.f32 0.0, %v1993
        %v1995 = vpop.f32.mrf.mxu0
        %1996 = vmatprep.mubr.bf16.mxu0 0
        %1997 = vmatmul.mubr.bf16.gmra.mxu0 %v1813
        %v1998 = vpop.f32.mrf.mxu0
        %v1999 = vadd.f32 0.0, %v1998
        %v2000 = vpop.f32.mrf.mxu0
        %v2001 = vpop.f32.mrf.mxu0
        %v2002 = vadd.f32 0.0, %v2001
        %v2003 = vpop.f32.mrf.mxu0
        %2004 = vmatprep.mubr.bf16.mxu0 0
        %2005 = vmatmul.mubr.bf16.gmra.mxu0 %v1816
        %v2006 = vpop.f32.mrf.mxu0
        %v2007 = vadd.f32 0.0, %v2006
        %v2008 = vpop.f32.mrf.mxu0
        %v2009 = vpop.f32.mrf.mxu0
        %v2010 = vadd.f32 0.0, %v2009
        %v2011 = vpop.f32.mrf.mxu0
        %2012 = vmatprep.mubr.bf16.mxu0 0
        %2013 = vmatmul.mubr.bf16.gmra.mxu0 %v1819
        %v2014 = vpop.f32.mrf.mxu0
        %v2015 = vadd.f32 0.0, %v2014
        %v2016 = vpop.f32.mrf.mxu0
        %v2017 = vpop.f32.mrf.mxu0
        %v2018 = vadd.f32 0.0, %v2017
        %v2019 = vpop.f32.mrf.mxu0
        %2020 = vmatprep.mubr.bf16.mxu0 0
        %2021 = vmatmul.mubr.bf16.gmra.mxu0 %v1822
        %v2022 = vpop.f32.mrf.mxu0
        %v2023 = vadd.f32 0.0, %v2022
        %v2024 = vpop.f32.mrf.mxu0
        %v2025 = vpop.f32.mrf.mxu0
        %v2026 = vadd.f32 0.0, %v2025
        %v2027 = vpop.f32.mrf.mxu0
        %2028 = vmatprep.mubr.bf16.mxu0 0
        %2029 = vmatmul.mubr.bf16.gmra.mxu0 %v1825
        %v2030 = vpop.f32.mrf.mxu0
        %v2031 = vadd.f32 0.0, %v2030
        %v2032 = vpop.f32.mrf.mxu0
        %v2033 = vpop.f32.mrf.mxu0
        %v2034 = vadd.f32 0.0, %v2033
        %v2035 = vpop.f32.mrf.mxu0
        %2036 = vmatprep.mubr.bf16.mxu0 0
        %2037 = vmatmul.mubr.bf16.gmra.mxu0 %v1828
        %v2038 = vpop.f32.mrf.mxu0
        %v2039 = vadd.f32 0.0, %v2038
        %v2040 = vpop.f32.mrf.mxu0
        %v2041 = vpop.f32.mrf.mxu0
        %v2042 = vadd.f32 0.0, %v2041
        %v2043 = vpop.f32.mrf.mxu0
        %2044 = vmatprep.mubr.bf16.mxu0 0
        %2045 = vmatmul.mubr.bf16.gmra.mxu0 %v1831
        %v2046 = vpop.f32.mrf.mxu0
        %v2047 = vadd.f32 0.0, %v2046
        %v2048 = vpop.f32.mrf.mxu0
        %v2049 = vpop.f32.mrf.mxu0
        %v2050 = vadd.f32 0.0, %v2049
        %v2051 = vpop.f32.mrf.mxu0
        %2052 = vmatprep.mubr.bf16.mxu0 0
        %2053 = vmatmul.mubr.bf16.gmra.mxu0 %v1834
        %v2054 = vpop.f32.mrf.mxu0
        %v2055 = vadd.f32 0.0, %v2054
        %v2056 = vpop.f32.mrf.mxu0
        %v2057 = vpop.f32.mrf.mxu0
        %v2058 = vadd.f32 0.0, %v2057
        %v2059 = vpop.f32.mrf.mxu0
        %2060 = vdwg.mxu0
        %v2061 = vld [vmem:[%s164] sm:$0xff]
        %v2062 = vld [vmem:[%s164 + $0x8] sm:$0xff]
        %v2063 = vld [vmem:[%s164 + $0x10] sm:$0xff]
        %v2064 = vld [vmem:[%s164 + $0x18] sm:$0xff]
        %v2065 = vld [vmem:[%s164 + $0x20] sm:$0xff]
        %v2066 = vld [vmem:[%s164 + $0x28] sm:$0xff]
        %v2067 = vld [vmem:[%s164 + $0x30] sm:$0xff]
        %v2068 = vld [vmem:[%s164 + $0x38] sm:$0xff]
        %v2069 = vld [vmem:[%s164 + $0x40] sm:$0xff]
        %v2070 = vld [vmem:[%s164 + $0x48] sm:$0xff]
        %v2071 = vld [vmem:[%s164 + $0x50] sm:$0xff]
        %v2072 = vld [vmem:[%s164 + $0x58] sm:$0xff]
        %v2073 = vld [vmem:[%s164 + $0x60] sm:$0xff]
        %v2074 = vld [vmem:[%s164 + $0x68] sm:$0xff]
        %v2075 = vld [vmem:[%s164 + $0x70] sm:$0xff]
        %v2076 = vld [vmem:[%s164 + $0x78] sm:$0xff]
        %v2077 = vld [vmem:[%s164 + $0x80] sm:$0xff]
        %v2078 = vld [vmem:[%s164 + $0x88] sm:$0xff]
        %v2079 = vld [vmem:[%s164 + $0x90] sm:$0xff]
        %v2080 = vld [vmem:[%s164 + $0x98] sm:$0xff]
        %v2081 = vld [vmem:[%s164 + $0xa0] sm:$0xff]
        %v2082 = vld [vmem:[%s164 + $0xa8] sm:$0xff]
        %v2083 = vld [vmem:[%s164 + $0xb0] sm:$0xff]
        %v2084 = vld [vmem:[%s164 + $0xb8] sm:$0xff]
        %v2085 = vld [vmem:[%s164 + $0xc0] sm:$0xff]
        %v2086 = vld [vmem:[%s164 + $0xc8] sm:$0xff]
        %v2087 = vld [vmem:[%s164 + $0xd0] sm:$0xff]
        %v2088 = vld [vmem:[%s164 + $0xd8] sm:$0xff]
        %v2089 = vld [vmem:[%s164 + $0xe0] sm:$0xff]
        %v2090 = vld [vmem:[%s164 + $0xe8] sm:$0xff]
        %v2091 = vld [vmem:[%s164 + $0xf0] sm:$0xff]
        %v2092 = vld [vmem:[%s164 + $0xf8] sm:$0xff]
        %v2093 = vld [vmem:[%s164 + $0x100] sm:$0xff]
        %v2094 = vld [vmem:[%s164 + $0x108] sm:$0xff]
        %v2095 = vld [vmem:[%s164 + $0x110] sm:$0xff]
        %v2096 = vld [vmem:[%s164 + $0x118] sm:$0xff]
        %v2097 = vld [vmem:[%s164 + $0x120] sm:$0xff]
        %v2098 = vld [vmem:[%s164 + $0x128] sm:$0xff]
        %v2099 = vld [vmem:[%s164 + $0x130] sm:$0xff]
        %v2100 = vld [vmem:[%s164 + $0x138] sm:$0xff]
        %v2101 = vld [vmem:[%s164 + $0x140] sm:$0xff]
        %v2102 = vld [vmem:[%s164 + $0x148] sm:$0xff]
        %v2103 = vld [vmem:[%s164 + $0x150] sm:$0xff]
        %v2104 = vld [vmem:[%s164 + $0x158] sm:$0xff]
        %v2105 = vld [vmem:[%s164 + $0x160] sm:$0xff]
        %v2106 = vld [vmem:[%s164 + $0x168] sm:$0xff]
        %v2107 = vld [vmem:[%s164 + $0x170] sm:$0xff]
        %v2108 = vld [vmem:[%s164 + $0x178] sm:$0xff]
        %v2109 = vrot.slane %v1871, 7
        %v2110 = vrot.slane %v1874, 7
        %v2111 = vrot.slane %v1879, 7
        %v2112 = vrot.slane %v1882, 7
        %v2113 = vrot.slane %v1887, 7
        %v2114 = vrot.slane %v1890, 7
        %v2115 = vrot.slane %v1895, 7
        %v2116 = vrot.slane %v1898, 7
        %v2117 = vrot.slane %v1903, 7
        %v2118 = vrot.slane %v1906, 7
        %v2119 = vrot.slane %v1911, 7
        %v2120 = vrot.slane %v1914, 7
        %v2121 = vrot.slane %v1919, 7
        %v2122 = vrot.slane %v1922, 7
        %v2123 = vrot.slane %v1927, 7
        %v2124 = vrot.slane %v1930, 7
        %v2125 = vrot.slane %v1935, 7
        %v2126 = vrot.slane %v1938, 7
        %v2127 = vrot.slane %v1943, 7
        %v2128 = vrot.slane %v1946, 7
        %v2129 = vrot.slane %v1951, 7
        %v2130 = vrot.slane %v1954, 7
        %v2131 = vrot.slane %v1959, 7
        %v2132 = vrot.slane %v1962, 7
        %v2133 = vrot.slane %v1967, 7
        %v2134 = vrot.slane %v1970, 7
        %v2135 = vrot.slane %v1975, 7
        %v2136 = vrot.slane %v1978, 7
        %v2137 = vrot.slane %v1983, 7
        %v2138 = vrot.slane %v1986, 7
        %v2139 = vrot.slane %v1991, 7
        %v2140 = vrot.slane %v1994, 7
        %v2141 = vrot.slane %v1999, 7
        %v2142 = vrot.slane %v2002, 7
        %v2143 = vrot.slane %v2007, 7
        %v2144 = vrot.slane %v2010, 7
        %v2145 = vrot.slane %v2015, 7
        %v2146 = vrot.slane %v2018, 7
        %v2147 = vrot.slane %v2023, 7
        %v2148 = vrot.slane %v2026, 7
        %v2149 = vrot.slane %v2031, 7
        %v2150 = vrot.slane %v2034, 7
        %v2151 = vrot.slane %v2039, 7
        %v2152 = vrot.slane %v2042, 7
        %v2153 = vrot.slane %v2047, 7
        %v2154 = vrot.slane %v2050, 7
        %v2155 = vrot.slane %v2055, 7
        %v2156 = vrot.slane %v2058, 7
        %vm2157 = vcmp.lt.s32.totalorder %v1401, 1
        %v2158 = vsel %vm2157, %v2155, %v2156
        %v2159 = vsel %vm2157, %v2154, %v2155
        %v2160 = vsel %vm2157, %v2153, %v2154
        %v2161 = vsel %vm2157, %v2152, %v2153
        %v2162 = vsel %vm2157, %v2151, %v2152
        %v2163 = vsel %vm2157, %v2150, %v2151
        %v2164 = vsel %vm2157, %v2149, %v2150
        %v2165 = vsel %vm2157, %v2148, %v2149
        %v2166 = vsel %vm2157, %v2147, %v2148
        %v2167 = vsel %vm2157, %v2146, %v2147
        %v2168 = vsel %vm2157, %v2145, %v2146
        %v2169 = vsel %vm2157, %v2144, %v2145
        %v2170 = vsel %vm2157, %v2143, %v2144
        %v2171 = vsel %vm2157, %v2142, %v2143
        %v2172 = vsel %vm2157, %v2141, %v2142
        %v2173 = vsel %vm2157, %v2140, %v2141
        %v2174 = vsel %vm2157, %v2139, %v2140
        %v2175 = vsel %vm2157, %v2138, %v2139
        %v2176 = vsel %vm2157, %v2137, %v2138
        %v2177 = vsel %vm2157, %v2136, %v2137
        %v2178 = vsel %vm2157, %v2135, %v2136
        %v2179 = vsel %vm2157, %v2134, %v2135
        %v2180 = vsel %vm2157, %v2133, %v2134
        %v2181 = vsel %vm2157, %v2132, %v2133
        %v2182 = vsel %vm2157, %v2131, %v2132
        %v2183 = vsel %vm2157, %v2130, %v2131
        %v2184 = vsel %vm2157, %v2129, %v2130
        %v2185 = vsel %vm2157, %v2128, %v2129
        %v2186 = vsel %vm2157, %v2127, %v2128
        %v2187 = vsel %vm2157, %v2126, %v2127
        %v2188 = vsel %vm2157, %v2125, %v2126
        %v2189 = vsel %vm2157, %v2124, %v2125
        %v2190 = vsel %vm2157, %v2123, %v2124
        %v2191 = vsel %vm2157, %v2122, %v2123
        %v2192 = vsel %vm2157, %v2121, %v2122
        %v2193 = vsel %vm2157, %v2120, %v2121
        %v2194 = vsel %vm2157, %v2119, %v2120
        %v2195 = vsel %vm2157, %v2118, %v2119
        %v2196 = vsel %vm2157, %v2117, %v2118
        %v2197 = vsel %vm2157, %v2116, %v2117
        %v2198 = vsel %vm2157, %v2115, %v2116
        %v2199 = vsel %vm2157, %v2114, %v2115
        %v2200 = vsel %vm2157, %v2113, %v2114
        %v2201 = vsel %vm2157, %v2112, %v2113
        %v2202 = vsel %vm2157, %v2111, %v2112
        %v2203 = vsel %vm2157, %v2110, %v2111
        %v2204 = vsel %vm2157, %v2109, %v2110
        %v2205 = vsel %vm2157, %v2156, %v2109
        %v2206 = vadd.f32 %v2061, %v2205
        %v2207 = vadd.f32 %v2062, %v2204
        %v2208 = vadd.f32 %v2063, %v2203
        %v2209 = vadd.f32 %v2064, %v2202
        %v2210 = vadd.f32 %v2065, %v2201
        %v2211 = vadd.f32 %v2066, %v2200
        %v2212 = vadd.f32 %v2067, %v2199
        %v2213 = vadd.f32 %v2068, %v2198
        %v2214 = vadd.f32 %v2069, %v2197
        %v2215 = vadd.f32 %v2070, %v2196
        %v2216 = vadd.f32 %v2071, %v2195
        %v2217 = vadd.f32 %v2072, %v2194
        %v2218 = vadd.f32 %v2073, %v2193
        %v2219 = vadd.f32 %v2074, %v2192
        %v2220 = vadd.f32 %v2075, %v2191
        %v2221 = vadd.f32 %v2076, %v2190
        %v2222 = vadd.f32 %v2077, %v2189
        %v2223 = vadd.f32 %v2078, %v2188
        %v2224 = vadd.f32 %v2079, %v2187
        %v2225 = vadd.f32 %v2080, %v2186
        %v2226 = vadd.f32 %v2081, %v2185
        %v2227 = vadd.f32 %v2082, %v2184
        %v2228 = vadd.f32 %v2083, %v2183
        %v2229 = vadd.f32 %v2084, %v2182
        %v2230 = vadd.f32 %v2085, %v2181
        %v2231 = vadd.f32 %v2086, %v2180
        %v2232 = vadd.f32 %v2087, %v2179
        %v2233 = vadd.f32 %v2088, %v2178
        %v2234 = vadd.f32 %v2089, %v2177
        %v2235 = vadd.f32 %v2090, %v2176
        %v2236 = vadd.f32 %v2091, %v2175
        %v2237 = vadd.f32 %v2092, %v2174
        %v2238 = vadd.f32 %v2093, %v2173
        %v2239 = vadd.f32 %v2094, %v2172
        %v2240 = vadd.f32 %v2095, %v2171
        %v2241 = vadd.f32 %v2096, %v2170
        %v2242 = vadd.f32 %v2097, %v2169
        %v2243 = vadd.f32 %v2098, %v2168
        %v2244 = vadd.f32 %v2099, %v2167
        %v2245 = vadd.f32 %v2100, %v2166
        %v2246 = vadd.f32 %v2101, %v2165
        %v2247 = vadd.f32 %v2102, %v2164
        %v2248 = vadd.f32 %v2103, %v2163
        %v2249 = vadd.f32 %v2104, %v2162
        %v2250 = vadd.f32 %v2105, %v2161
        %v2251 = vadd.f32 %v2106, %v2160
        %v2252 = vadd.f32 %v2107, %v2159
        %v2253 = vadd.f32 %v2108, %v2158
        %2254 = vst [vmem:[%s164] sm:$0xff] %v2206
        %2255 = vst [vmem:[%s164 + $0x8] sm:$0xff] %v2207
        %2256 = vst [vmem:[%s164 + $0x10] sm:$0xff] %v2208
        %2257 = vst [vmem:[%s164 + $0x18] sm:$0xff] %v2209
        %2258 = vst [vmem:[%s164 + $0x20] sm:$0xff] %v2210
        %2259 = vst [vmem:[%s164 + $0x28] sm:$0xff] %v2211
        %2260 = vst [vmem:[%s164 + $0x30] sm:$0xff] %v2212
        %2261 = vst [vmem:[%s164 + $0x38] sm:$0xff] %v2213
        %2262 = vst [vmem:[%s164 + $0x40] sm:$0xff] %v2214
        %2263 = vst [vmem:[%s164 + $0x48] sm:$0xff] %v2215
        %2264 = vst [vmem:[%s164 + $0x50] sm:$0xff] %v2216
        %2265 = vst [vmem:[%s164 + $0x58] sm:$0xff] %v2217
        %2266 = vst [vmem:[%s164 + $0x60] sm:$0xff] %v2218
        %2267 = vst [vmem:[%s164 + $0x68] sm:$0xff] %v2219
        %2268 = vst [vmem:[%s164 + $0x70] sm:$0xff] %v2220
        %2269 = vst [vmem:[%s164 + $0x78] sm:$0xff] %v2221
        %2270 = vst [vmem:[%s164 + $0x80] sm:$0xff] %v2222
        %2271 = vst [vmem:[%s164 + $0x88] sm:$0xff] %v2223
        %2272 = vst [vmem:[%s164 + $0x90] sm:$0xff] %v2224
        %2273 = vst [vmem:[%s164 + $0x98] sm:$0xff] %v2225
        %2274 = vst [vmem:[%s164 + $0xa0] sm:$0xff] %v2226
        %2275 = vst [vmem:[%s164 + $0xa8] sm:$0xff] %v2227
        %2276 = vst [vmem:[%s164 + $0xb0] sm:$0xff] %v2228
        %2277 = vst [vmem:[%s164 + $0xb8] sm:$0xff] %v2229
        %2278 = vst [vmem:[%s164 + $0xc0] sm:$0xff] %v2230
        %2279 = vst [vmem:[%s164 + $0xc8] sm:$0xff] %v2231
        %2280 = vst [vmem:[%s164 + $0xd0] sm:$0xff] %v2232
        %2281 = vst [vmem:[%s164 + $0xd8] sm:$0xff] %v2233
        %2282 = vst [vmem:[%s164 + $0xe0] sm:$0xff] %v2234
        %2283 = vst [vmem:[%s164 + $0xe8] sm:$0xff] %v2235
        %2284 = vst [vmem:[%s164 + $0xf0] sm:$0xff] %v2236
        %2285 = vst [vmem:[%s164 + $0xf8] sm:$0xff] %v2237
        %2286 = vst [vmem:[%s164 + $0x100] sm:$0xff] %v2238
        %2287 = vst [vmem:[%s164 + $0x108] sm:$0xff] %v2239
        %2288 = vst [vmem:[%s164 + $0x110] sm:$0xff] %v2240
        %2289 = vst [vmem:[%s164 + $0x118] sm:$0xff] %v2241
        %2290 = vst [vmem:[%s164 + $0x120] sm:$0xff] %v2242
        %2291 = vst [vmem:[%s164 + $0x128] sm:$0xff] %v2243
        %2292 = vst [vmem:[%s164 + $0x130] sm:$0xff] %v2244
        %2293 = vst [vmem:[%s164 + $0x138] sm:$0xff] %v2245
        %2294 = vst [vmem:[%s164 + $0x140] sm:$0xff] %v2246
        %2295 = vst [vmem:[%s164 + $0x148] sm:$0xff] %v2247
        %2296 = vst [vmem:[%s164 + $0x150] sm:$0xff] %v2248
        %2297 = vst [vmem:[%s164 + $0x158] sm:$0xff] %v2249
        %2298 = vst [vmem:[%s164 + $0x160] sm:$0xff] %v2250
        %2299 = vst [vmem:[%s164 + $0x168] sm:$0xff] %v2251
        %2300 = vst [vmem:[%s164 + $0x170] sm:$0xff] %v2252
        %2301 = vst [vmem:[%s164 + $0x178] sm:$0xff] %v2253
        %v2302 = vld [vmem:[%s164] sm:$0xff]
        %v2303 = vld [vmem:[%s164 + $0x8] sm:$0xff]
        %v2304 = vld [vmem:[%s164 + $0x10] sm:$0xff]
        %v2305 = vld [vmem:[%s164 + $0x18] sm:$0xff]
        %v2306 = vld [vmem:[%s164 + $0x20] sm:$0xff]
        %v2307 = vld [vmem:[%s164 + $0x28] sm:$0xff]
        %v2308 = vld [vmem:[%s164 + $0x30] sm:$0xff]
        %v2309 = vld [vmem:[%s164 + $0x38] sm:$0xff]
        %v2310 = vld [vmem:[%s164 + $0x40] sm:$0xff]
        %v2311 = vld [vmem:[%s164 + $0x48] sm:$0xff]
        %v2312 = vld [vmem:[%s164 + $0x50] sm:$0xff]
        %v2313 = vld [vmem:[%s164 + $0x58] sm:$0xff]
        %v2314 = vld [vmem:[%s164 + $0x60] sm:$0xff]
        %v2315 = vld [vmem:[%s164 + $0x68] sm:$0xff]
        %v2316 = vld [vmem:[%s164 + $0x70] sm:$0xff]
        %v2317 = vld [vmem:[%s164 + $0x78] sm:$0xff]
        %v2318 = vld [vmem:[%s164 + $0x80] sm:$0xff]
        %v2319 = vld [vmem:[%s164 + $0x88] sm:$0xff]
        %v2320 = vld [vmem:[%s164 + $0x90] sm:$0xff]
        %v2321 = vld [vmem:[%s164 + $0x98] sm:$0xff]
        %v2322 = vld [vmem:[%s164 + $0xa0] sm:$0xff]
        %v2323 = vld [vmem:[%s164 + $0xa8] sm:$0xff]
        %v2324 = vld [vmem:[%s164 + $0xb0] sm:$0xff]
        %v2325 = vld [vmem:[%s164 + $0xb8] sm:$0xff]
        %v2326 = vld [vmem:[%s164 + $0xc0] sm:$0xff]
        %v2327 = vld [vmem:[%s164 + $0xc8] sm:$0xff]
        %v2328 = vld [vmem:[%s164 + $0xd0] sm:$0xff]
        %v2329 = vld [vmem:[%s164 + $0xd8] sm:$0xff]
        %v2330 = vld [vmem:[%s164 + $0xe0] sm:$0xff]
        %v2331 = vld [vmem:[%s164 + $0xe8] sm:$0xff]
        %v2332 = vld [vmem:[%s164 + $0xf0] sm:$0xff]
        %v2333 = vld [vmem:[%s164 + $0xf8] sm:$0xff]
        %v2334 = vld [vmem:[%s164 + $0x100] sm:$0xff]
        %v2335 = vld [vmem:[%s164 + $0x108] sm:$0xff]
        %v2336 = vld [vmem:[%s164 + $0x110] sm:$0xff]
        %v2337 = vld [vmem:[%s164 + $0x118] sm:$0xff]
        %v2338 = vld [vmem:[%s164 + $0x120] sm:$0xff]
        %v2339 = vld [vmem:[%s164 + $0x128] sm:$0xff]
        %v2340 = vld [vmem:[%s164 + $0x130] sm:$0xff]
        %v2341 = vld [vmem:[%s164 + $0x138] sm:$0xff]
        %v2342 = vld [vmem:[%s164 + $0x140] sm:$0xff]
        %v2343 = vld [vmem:[%s164 + $0x148] sm:$0xff]
        %v2344 = vld [vmem:[%s164 + $0x150] sm:$0xff]
        %v2345 = vld [vmem:[%s164 + $0x158] sm:$0xff]
        %v2346 = vld [vmem:[%s164 + $0x160] sm:$0xff]
        %v2347 = vld [vmem:[%s164 + $0x168] sm:$0xff]
        %v2348 = vld [vmem:[%s164 + $0x170] sm:$0xff]
        %v2349 = vld [vmem:[%s164 + $0x178] sm:$0xff]
        %v2350 = vsub.f32 0.0, %v2302
        %v2351 = vsub.f32 0.0, %v2303
        %v2352 = vsub.f32 0.0, %v2304
        %v2353 = vsub.f32 0.0, %v2305
        %v2354 = vsub.f32 0.0, %v2306
        %v2355 = vsub.f32 0.0, %v2307
        %v2356 = vsub.f32 0.0, %v2308
        %v2357 = vsub.f32 0.0, %v2309
        %v2358 = vsub.f32 0.0, %v2310
        %v2359 = vsub.f32 0.0, %v2311
        %v2360 = vsub.f32 0.0, %v2312
        %v2361 = vsub.f32 0.0, %v2313
        %v2362 = vsub.f32 0.0, %v2314
        %v2363 = vsub.f32 0.0, %v2315
        %v2364 = vsub.f32 0.0, %v2316
        %v2365 = vsub.f32 0.0, %v2317
        %v2366 = vsub.f32 0.0, %v2318
        %v2367 = vsub.f32 0.0, %v2319
        %v2368 = vsub.f32 0.0, %v2320
        %v2369 = vsub.f32 0.0, %v2321
        %v2370 = vsub.f32 0.0, %v2322
        %v2371 = vsub.f32 0.0, %v2323
        %v2372 = vsub.f32 0.0, %v2324
        %v2373 = vsub.f32 0.0, %v2325
        %v2374 = vsub.f32 0.0, %v2326
        %v2375 = vsub.f32 0.0, %v2327
        %v2376 = vsub.f32 0.0, %v2328
        %v2377 = vsub.f32 0.0, %v2329
        %v2378 = vsub.f32 0.0, %v2330
        %v2379 = vsub.f32 0.0, %v2331
        %v2380 = vsub.f32 0.0, %v2332
        %v2381 = vsub.f32 0.0, %v2333
        %v2382 = vsub.f32 0.0, %v2334
        %v2383 = vsub.f32 0.0, %v2335
        %v2384 = vsub.f32 0.0, %v2336
        %v2385 = vsub.f32 0.0, %v2337
        %v2386 = vsub.f32 0.0, %v2338
        %v2387 = vsub.f32 0.0, %v2339
        %v2388 = vsub.f32 0.0, %v2340
        %v2389 = vsub.f32 0.0, %v2341
        %v2390 = vsub.f32 0.0, %v2342
        %v2391 = vsub.f32 0.0, %v2343
        %v2392 = vsub.f32 0.0, %v2344
        %v2393 = vsub.f32 0.0, %v2345
        %v2394 = vsub.f32 0.0, %v2346
        %v2395 = vsub.f32 0.0, %v2347
        %v2396 = vsub.f32 0.0, %v2348
        %v2397 = vsub.f32 0.0, %v2349
        %v2398 = vmul.f32 %v2350, 1.442695
        %v2399 = vpow.pop %v2398
        %v2400 = vmul.f32 %v2351, 1.442695
        %v2401 = vpow.pop %v2400
        %v2402 = vmul.f32 %v2352, 1.442695
        %v2403 = vpow.pop %v2402
        %v2404 = vmul.f32 %v2353, 1.442695
        %v2405 = vpow.pop %v2404
        %v2406 = vmul.f32 %v2354, 1.442695
        %v2407 = vpow.pop %v2406
        %v2408 = vmul.f32 %v2355, 1.442695
        %v2409 = vpow.pop %v2408
        %v2410 = vmul.f32 %v2356, 1.442695
        %v2411 = vpow.pop %v2410
        %v2412 = vmul.f32 %v2357, 1.442695
        %v2413 = vpow.pop %v2412
        %v2414 = vmul.f32 %v2358, 1.442695
        %v2415 = vpow.pop %v2414
        %v2416 = vmul.f32 %v2359, 1.442695
        %v2417 = vpow.pop %v2416
        %v2418 = vmul.f32 %v2360, 1.442695
        %v2419 = vpow.pop %v2418
        %v2420 = vmul.f32 %v2361, 1.442695
        %v2421 = vpow.pop %v2420
        %v2422 = vmul.f32 %v2362, 1.442695
        %v2423 = vpow.pop %v2422
        %v2424 = vmul.f32 %v2363, 1.442695
        %v2425 = vpow.pop %v2424
        %v2426 = vmul.f32 %v2364, 1.442695
        %v2427 = vpow.pop %v2426
        %v2428 = vmul.f32 %v2365, 1.442695
        %v2429 = vpow.pop %v2428
        %v2430 = vmul.f32 %v2366, 1.442695
        %v2431 = vpow.pop %v2430
        %v2432 = vmul.f32 %v2367, 1.442695
        %v2433 = vpow.pop %v2432
        %v2434 = vmul.f32 %v2368, 1.442695
        %v2435 = vpow.pop %v2434
        %v2436 = vmul.f32 %v2369, 1.442695
        %v2437 = vpow.pop %v2436
        %v2438 = vmul.f32 %v2370, 1.442695
        %v2439 = vpow.pop %v2438
        %v2440 = vmul.f32 %v2371, 1.442695
        %v2441 = vpow.pop %v2440
        %v2442 = vmul.f32 %v2372, 1.442695
        %v2443 = vpow.pop %v2442
        %v2444 = vmul.f32 %v2373, 1.442695
        %v2445 = vpow.pop %v2444
        %v2446 = vmul.f32 %v2374, 1.442695
        %v2447 = vpow.pop %v2446
        %v2448 = vmul.f32 %v2375, 1.442695
        %v2449 = vpow.pop %v2448
        %v2450 = vmul.f32 %v2376, 1.442695
        %v2451 = vpow.pop %v2450
        %v2452 = vmul.f32 %v2377, 1.442695
        %v2453 = vpow.pop %v2452
        %v2454 = vmul.f32 %v2378, 1.442695
        %v2455 = vpow.pop %v2454
        %v2456 = vmul.f32 %v2379, 1.442695
        %v2457 = vpow.pop %v2456
        %v2458 = vmul.f32 %v2380, 1.442695
        %v2459 = vpow.pop %v2458
        %v2460 = vmul.f32 %v2381, 1.442695
        %v2461 = vpow.pop %v2460
        %v2462 = vmul.f32 %v2382, 1.442695
        %v2463 = vpow.pop %v2462
        %v2464 = vmul.f32 %v2383, 1.442695
        %v2465 = vpow.pop %v2464
        %v2466 = vmul.f32 %v2384, 1.442695
        %v2467 = vpow.pop %v2466
        %v2468 = vmul.f32 %v2385, 1.442695
        %v2469 = vpow.pop %v2468
        %v2470 = vmul.f32 %v2386, 1.442695
        %v2471 = vpow.pop %v2470
        %v2472 = vmul.f32 %v2387, 1.442695
        %v2473 = vpow.pop %v2472
        %v2474 = vmul.f32 %v2388, 1.442695
        %v2475 = vpow.pop %v2474
        %v2476 = vmul.f32 %v2389, 1.442695
        %v2477 = vpow.pop %v2476
        %v2478 = vmul.f32 %v2390, 1.442695
        %v2479 = vpow.pop %v2478
        %v2480 = vmul.f32 %v2391, 1.442695
        %v2481 = vpow.pop %v2480
        %v2482 = vmul.f32 %v2392, 1.442695
        %v2483 = vpow.pop %v2482
        %v2484 = vmul.f32 %v2393, 1.442695
        %v2485 = vpow.pop %v2484
        %v2486 = vmul.f32 %v2394, 1.442695
        %v2487 = vpow.pop %v2486
        %v2488 = vmul.f32 %v2395, 1.442695
        %v2489 = vpow.pop %v2488
        %v2490 = vmul.f32 %v2396, 1.442695
        %v2491 = vpow.pop %v2490
        %v2492 = vmul.f32 %v2397, 1.442695
        %v2493 = vpow.pop %v2492
        %v2494 = vadd.f32 %v2399, 1.0
        %v2495 = vadd.f32 %v2401, 1.0
        %v2496 = vadd.f32 %v2403, 1.0
        %v2497 = vadd.f32 %v2405, 1.0
        %v2498 = vadd.f32 %v2407, 1.0
        %v2499 = vadd.f32 %v2409, 1.0
        %v2500 = vadd.f32 %v2411, 1.0
        %v2501 = vadd.f32 %v2413, 1.0
        %v2502 = vadd.f32 %v2415, 1.0
        %v2503 = vadd.f32 %v2417, 1.0
        %v2504 = vadd.f32 %v2419, 1.0
        %v2505 = vadd.f32 %v2421, 1.0
        %v2506 = vadd.f32 %v2423, 1.0
        %v2507 = vadd.f32 %v2425, 1.0
        %v2508 = vadd.f32 %v2427, 1.0
        %v2509 = vadd.f32 %v2429, 1.0
        %v2510 = vadd.f32 %v2431, 1.0
        %v2511 = vadd.f32 %v2433, 1.0
        %v2512 = vadd.f32 %v2435, 1.0
        %v2513 = vadd.f32 %v2437, 1.0
        %v2514 = vadd.f32 %v2439, 1.0
        %v2515 = vadd.f32 %v2441, 1.0
        %v2516 = vadd.f32 %v2443, 1.0
        %v2517 = vadd.f32 %v2445, 1.0
        %v2518 = vadd.f32 %v2447, 1.0
        %v2519 = vadd.f32 %v2449, 1.0
        %v2520 = vadd.f32 %v2451, 1.0
        %v2521 = vadd.f32 %v2453, 1.0
        %v2522 = vadd.f32 %v2455, 1.0
        %v2523 = vadd.f32 %v2457, 1.0
        %v2524 = vadd.f32 %v2459, 1.0
        %v2525 = vadd.f32 %v2461, 1.0
        %v2526 = vadd.f32 %v2463, 1.0
        %v2527 = vadd.f32 %v2465, 1.0
        %v2528 = vadd.f32 %v2467, 1.0
        %v2529 = vadd.f32 %v2469, 1.0
        %v2530 = vadd.f32 %v2471, 1.0
        %v2531 = vadd.f32 %v2473, 1.0
        %v2532 = vadd.f32 %v2475, 1.0
        %v2533 = vadd.f32 %v2477, 1.0
        %v2534 = vadd.f32 %v2479, 1.0
        %v2535 = vadd.f32 %v2481, 1.0
        %v2536 = vadd.f32 %v2483, 1.0
        %v2537 = vadd.f32 %v2485, 1.0
        %v2538 = vadd.f32 %v2487, 1.0
        %v2539 = vadd.f32 %v2489, 1.0
        %v2540 = vadd.f32 %v2491, 1.0
        %v2541 = vadd.f32 %v2493, 1.0
        %v2542 = vrcp.pop %v2494
        %v2543 = vmul.f32 1.0, %v2542
        %v2544 = vrcp.pop %v2495
        %v2545 = vmul.f32 1.0, %v2544
        %v2546 = vrcp.pop %v2496
        %v2547 = vmul.f32 1.0, %v2546
        %v2548 = vrcp.pop %v2497
        %v2549 = vmul.f32 1.0, %v2548
        %v2550 = vrcp.pop %v2498
        %v2551 = vmul.f32 1.0, %v2550
        %v2552 = vrcp.pop %v2499
        %v2553 = vmul.f32 1.0, %v2552
        %v2554 = vrcp.pop %v2500
        %v2555 = vmul.f32 1.0, %v2554
        %v2556 = vrcp.pop %v2501
        %v2557 = vmul.f32 1.0, %v2556
        %v2558 = vrcp.pop %v2502
        %v2559 = vmul.f32 1.0, %v2558
        %v2560 = vrcp.pop %v2503
        %v2561 = vmul.f32 1.0, %v2560
        %v2562 = vrcp.pop %v2504
        %v2563 = vmul.f32 1.0, %v2562
        %v2564 = vrcp.pop %v2505
        %v2565 = vmul.f32 1.0, %v2564
        %v2566 = vrcp.pop %v2506
        %v2567 = vmul.f32 1.0, %v2566
        %v2568 = vrcp.pop %v2507
        %v2569 = vmul.f32 1.0, %v2568
        %v2570 = vrcp.pop %v2508
        %v2571 = vmul.f32 1.0, %v2570
        %v2572 = vrcp.pop %v2509
        %v2573 = vmul.f32 1.0, %v2572
        %v2574 = vrcp.pop %v2510
        %v2575 = vmul.f32 1.0, %v2574
        %v2576 = vrcp.pop %v2511
        %v2577 = vmul.f32 1.0, %v2576
        %v2578 = vrcp.pop %v2512
        %v2579 = vmul.f32 1.0, %v2578
        %v2580 = vrcp.pop %v2513
        %v2581 = vmul.f32 1.0, %v2580
        %v2582 = vrcp.pop %v2514
        %v2583 = vmul.f32 1.0, %v2582
        %v2584 = vrcp.pop %v2515
        %v2585 = vmul.f32 1.0, %v2584
        %v2586 = vrcp.pop %v2516
        %v2587 = vmul.f32 1.0, %v2586
        %v2588 = vrcp.pop %v2517
        %v2589 = vmul.f32 1.0, %v2588
        %v2590 = vrcp.pop %v2518
        %v2591 = vmul.f32 1.0, %v2590
        %v2592 = vrcp.pop %v2519
        %v2593 = vmul.f32 1.0, %v2592
        %v2594 = vrcp.pop %v2520
        %v2595 = vmul.f32 1.0, %v2594
        %v2596 = vrcp.pop %v2521
        %v2597 = vmul.f32 1.0, %v2596
        %v2598 = vrcp.pop %v2522
        %v2599 = vmul.f32 1.0, %v2598
        %v2600 = vrcp.pop %v2523
        %v2601 = vmul.f32 1.0, %v2600
        %v2602 = vrcp.pop %v2524
        %v2603 = vmul.f32 1.0, %v2602
        %v2604 = vrcp.pop %v2525
        %v2605 = vmul.f32 1.0, %v2604
        %v2606 = vrcp.pop %v2526
        %v2607 = vmul.f32 1.0, %v2606
        %v2608 = vrcp.pop %v2527
        %v2609 = vmul.f32 1.0, %v2608
        %v2610 = vrcp.pop %v2528
        %v2611 = vmul.f32 1.0, %v2610
        %v2612 = vrcp.pop %v2529
        %v2613 = vmul.f32 1.0, %v2612
        %v2614 = vrcp.pop %v2530
        %v2615 = vmul.f32 1.0, %v2614
        %v2616 = vrcp.pop %v2531
        %v2617 = vmul.f32 1.0, %v2616
        %v2618 = vrcp.pop %v2532
        %v2619 = vmul.f32 1.0, %v2618
        %v2620 = vrcp.pop %v2533
        %v2621 = vmul.f32 1.0, %v2620
        %v2622 = vrcp.pop %v2534
        %v2623 = vmul.f32 1.0, %v2622
        %v2624 = vrcp.pop %v2535
        %v2625 = vmul.f32 1.0, %v2624
        %v2626 = vrcp.pop %v2536
        %v2627 = vmul.f32 1.0, %v2626
        %v2628 = vrcp.pop %v2537
        %v2629 = vmul.f32 1.0, %v2628
        %v2630 = vrcp.pop %v2538
        %v2631 = vmul.f32 1.0, %v2630
        %v2632 = vrcp.pop %v2539
        %v2633 = vmul.f32 1.0, %v2632
        %v2634 = vrcp.pop %v2540
        %v2635 = vmul.f32 1.0, %v2634
        %v2636 = vrcp.pop %v2541
        %v2637 = vmul.f32 1.0, %v2636
        %2638 = vst [vmem:[%s164] sm:$0xff] %v2543
        %2639 = vst [vmem:[%s164 + $0x8] sm:$0xff] %v2545
        %2640 = vst [vmem:[%s164 + $0x10] sm:$0xff] %v2547
        %2641 = vst [vmem:[%s164 + $0x18] sm:$0xff] %v2549
        %2642 = vst [vmem:[%s164 + $0x20] sm:$0xff] %v2551
        %2643 = vst [vmem:[%s164 + $0x28] sm:$0xff] %v2553
        %2644 = vst [vmem:[%s164 + $0x30] sm:$0xff] %v2555
        %2645 = vst [vmem:[%s164 + $0x38] sm:$0xff] %v2557
        %2646 = vst [vmem:[%s164 + $0x40] sm:$0xff] %v2559
        %2647 = vst [vmem:[%s164 + $0x48] sm:$0xff] %v2561
        %2648 = vst [vmem:[%s164 + $0x50] sm:$0xff] %v2563
        %2649 = vst [vmem:[%s164 + $0x58] sm:$0xff] %v2565
        %2650 = vst [vmem:[%s164 + $0x60] sm:$0xff] %v2567
        %2651 = vst [vmem:[%s164 + $0x68] sm:$0xff] %v2569
        %2652 = vst [vmem:[%s164 + $0x70] sm:$0xff] %v2571
        %2653 = vst [vmem:[%s164 + $0x78] sm:$0xff] %v2573
        %2654 = vst [vmem:[%s164 + $0x80] sm:$0xff] %v2575
        %2655 = vst [vmem:[%s164 + $0x88] sm:$0xff] %v2577
        %2656 = vst [vmem:[%s164 + $0x90] sm:$0xff] %v2579
        %2657 = vst [vmem:[%s164 + $0x98] sm:$0xff] %v2581
        %2658 = vst [vmem:[%s164 + $0xa0] sm:$0xff] %v2583
        %2659 = vst [vmem:[%s164 + $0xa8] sm:$0xff] %v2585
        %2660 = vst [vmem:[%s164 + $0xb0] sm:$0xff] %v2587
        %2661 = vst [vmem:[%s164 + $0xb8] sm:$0xff] %v2589
        %2662 = vst [vmem:[%s164 + $0xc0] sm:$0xff] %v2591
        %2663 = vst [vmem:[%s164 + $0xc8] sm:$0xff] %v2593
        %2664 = vst [vmem:[%s164 + $0xd0] sm:$0xff] %v2595
        %2665 = vst [vmem:[%s164 + $0xd8] sm:$0xff] %v2597
        %2666 = vst [vmem:[%s164 + $0xe0] sm:$0xff] %v2599
        %2667 = vst [vmem:[%s164 + $0xe8] sm:$0xff] %v2601
        %2668 = vst [vmem:[%s164 + $0xf0] sm:$0xff] %v2603
        %2669 = vst [vmem:[%s164 + $0xf8] sm:$0xff] %v2605
        %2670 = vst [vmem:[%s164 + $0x100] sm:$0xff] %v2607
        %2671 = vst [vmem:[%s164 + $0x108] sm:$0xff] %v2609
        %2672 = vst [vmem:[%s164 + $0x110] sm:$0xff] %v2611
        %2673 = vst [vmem:[%s164 + $0x118] sm:$0xff] %v2613
        %2674 = vst [vmem:[%s164 + $0x120] sm:$0xff] %v2615
        %2675 = vst [vmem:[%s164 + $0x128] sm:$0xff] %v2617
        %2676 = vst [vmem:[%s164 + $0x130] sm:$0xff] %v2619
        %2677 = vst [vmem:[%s164 + $0x138] sm:$0xff] %v2621
        %2678 = vst [vmem:[%s164 + $0x140] sm:$0xff] %v2623
        %2679 = vst [vmem:[%s164 + $0x148] sm:$0xff] %v2625
        %2680 = vst [vmem:[%s164 + $0x150] sm:$0xff] %v2627
        %2681 = vst [vmem:[%s164 + $0x158] sm:$0xff] %v2629
        %2682 = vst [vmem:[%s164 + $0x160] sm:$0xff] %v2631
        %2683 = vst [vmem:[%s164 + $0x168] sm:$0xff] %v2633
        %2684 = vst [vmem:[%s164 + $0x170] sm:$0xff] %v2635
        %2685 = vst [vmem:[%s164 + $0x178] sm:$0xff] %v2637
        %s2686 = sand.u32 %s93, 1
        %s2687 = scalar_lea.sflag [#allocation3], %s2686
        %s2688 = sand.u32 %s93, 1
        %s2689 = smul.addr %s2688, 384
        %s2690 = scalar_lea.vmem [#allocation2], %s2689
        // Predicated region
        $region33: #{tpu_custom_call.1} parent=31 // pred_check
          %p2691 = pneg %p103
        $region34: #{tpu_custom_call.1} parent=31 // pred_check_branch
          %2693 = sbr.rel (%p2691) target = $region36
        $region35: #{tpu_custom_call.1} parent=31 // pred_region
          %s2694 = smul.u32 48, %s17
          %s2696 = ssub.s32 6144, 6144
          %2697 = vsyncadd %s2687, %s2696
          %s2698 = smul.addr %s2694, 128
          %s2699 = scalar_lea.hbm %s3, %s2698
          %s2700 = sshll.u32 %s2690, 4
          %s2701 = int_to_ptr.vmem [resolvable:$true] %s2700
          %2706 = dma.vmem_to_hbm [thread:$0]  %s2701, 6144, %s2699, %s2687, 128, 128, 8
        $region36: #{tpu_custom_call.1} parent=31 // pred_fallthru
          _
      $region32: #{tpu_custom_call.1} parent=5 // pred_fallthru
        _
      %p2707 = scmp.le.s32.totalorder 2, %s12
      // Predicated region
      $region37: #{tpu_custom_call.1} parent=5 // pred_check
        %p2708 = pneg %p2707
      $region38: #{tpu_custom_call.1} parent=5 // pred_check_branch
        %2710 = sbr.rel (%p2708) target = $region40
      $region39: #{tpu_custom_call.1} parent=5 // pred_region
        %s2711 = ssub.s32 %s12, 2
        // Predicated region
        $region41: #{tpu_custom_call.1} parent=39 // pred_check
          %p2712 = pneg %p109
        $region42: #{tpu_custom_call.1} parent=39 // pred_check_branch
          %2714 = sbr.rel (%p2712) target = $region44
        $region43: #{tpu_custom_call.1} parent=39 // pred_region
          %s2715 = sand.u32 %s94, 1
          %s2716 = scalar_lea.sflag [#allocation3], %s2715
          %s2717 = sand.u32 %s94, 1
          %s2718 = smul.addr %s2717, 384
          %s2719 = scalar_lea.vmem [#allocation2], %s2718
          %2720 = dma.done %s2716, 6144
        $region44: #{tpu_custom_call.1} parent=39 // pred_fallthru
          _
      $region40: #{tpu_custom_call.1} parent=5 // pred_fallthru
        _
    $region6: #{tpu_custom_call.1} parent=1 // loop_footer
      %s16 = sadd.s32 1, %s12
    $region7: #{tpu_custom_call.1} parent=1 // loop_footer_branch
      %11 = sbr.rel target = $region3
    $region8: #{tpu_custom_call.1} parent=1 // loop_exit
      _
    %2721 = vsyncpa [#allocation3], 1
    %s2722 = scalar_lea.sflag [#allocation3], 1
    %2723 = vsyncpa %s2722, 1

</llo_original>
